<compile_context>
chip_gen: v7x
topology: tpu7x:2x2x1
jax: 0.10.0
libtpu: 0.0.40
codegen_flags: <defaults>
</compile_context>

<pallas_src>
import jax
import jax.numpy as jnp
from jax.experimental import pallas as pl
from jax.experimental.pallas import tpu as pltpu


def postprocess_kernel(idx_ref, p1_ref, p2_ref, b1_ref, w2_ref, b2_ref, out_ref):
    # idx_ref: (2, tile_e) int32     edge endpoints for this tile
    # p1_ref:  (2D, num_nodes)       (node_feature @ W1f[:D]).T  (resident)
    # p2_ref:  (2D, num_nodes)       (node_feature @ W1f[D:]).T  (resident)
    # b1_ref:  (2D, 1)               BN-folded Linear1 bias
    # w2_ref:  (dim_out, 2D)         Linear2 weight, transposed
    # b2_ref:  (dim_out, 1)          Linear2 bias
    # out_ref: (dim_out, tile_e)     lane-dense output tile (edges on lanes)
    num_nodes = p1_ref.shape[1]

    idx = idx_ref[...]                                           # (2, tile_e)
    # Narrow iota column; broadcast happens inside the compare (VALU), keeping
    # the full-width int iota out of the vreg file.
    node_ids = jax.lax.broadcasted_iota(jnp.int32, (num_nodes, 1), 0)

    # Endpoint-1: build one-hot, consume it immediately (oh1 dead before oh2).
    oh1 = (node_ids == idx[0:1, :]).astype(jnp.float32)          # (N, tile_e)
    h = jnp.dot(p1_ref[...], oh1, preferred_element_type=jnp.float32)
    # Endpoint-2.
    oh2 = (node_ids == idx[1:2, :]).astype(jnp.float32)
    h = h + jnp.dot(p2_ref[...], oh2, preferred_element_type=jnp.float32)

    # + folded (Linear1 + BatchNorm) bias; Dropout(eval)=identity; ReLU.
    h = jnp.maximum(h + b1_ref[...], 0.0)

    # Linear2 -> (dim_out, tile_e); lane-dense store.
    y = jnp.dot(w2_ref[...], h, preferred_element_type=jnp.float32) + b2_ref[...]
    out_ref[...] = y.astype(out_ref.dtype)


def prepare_postprocess_operands(node_feature, params):
    """BN-fold Linear1 and pre-project the node table.  Cache the result when
    the same node table serves many edge batches (hoists the wrapper-side
    transposes/matmuls out of the per-call hot path)."""
    w1, b1, gamma, beta, run_mean, run_var, eps, w2, b2 = params
    _, D = node_feature.shape

    # Fold eval-mode BatchNorm into Linear1 (pure constant folding).
    bn_scale = gamma / jnp.sqrt(run_var + eps)                   # (2D,)
    w1f = w1 * bn_scale[None, :]                                 # (2D, 2D)
    b1f = b1 * bn_scale + (beta - run_mean * bn_scale)           # (2D,)

    hi = jax.lax.Precision.HIGHEST   # one-time prep; keep it exact-ish f32
    p1 = jnp.dot(node_feature, w1f[:D, :], precision=hi).T       # (2D, N)
    p2 = jnp.dot(node_feature, w1f[D:, :], precision=hi).T       # (2D, N)
    b1_t = b1f.reshape(2 * D, 1)
    w2_t = w2.T                                                  # (dim_out, 2D)
    b2_t = b2.reshape(-1, 1)                                     # (dim_out, 1)
    return p1, p2, b1_t, w2_t, b2_t


def _postprocess_call(idx, p1, p2, b1_t, w2_t, b2_t, *, tile_e, n_tiles,
                      resident_mode):
    D2, num_nodes = p1.shape
    dim_out = w2_t.shape[0]
    E_pad = n_tiles * tile_e
    full = lambda i: (0, 0)
    # Resident operands: constant block index -> single buffer is enough.
    res_kw = {} if resident_mode is None else {"pipeline_mode": resident_mode}

    return pl.pallas_call(
        postprocess_kernel,
        out_shape=jax.ShapeDtypeStruct((dim_out, E_pad), jnp.float32),
        grid_spec=pltpu.PrefetchScalarGridSpec(
            num_scalar_prefetch=0,
            grid=(n_tiles,),
            in_specs=[
                pl.BlockSpec((2, tile_e), lambda i: (0, i)),           # indices
                pl.BlockSpec((D2, num_nodes), full, **res_kw),         # P1 (resident)
                pl.BlockSpec((D2, num_nodes), full, **res_kw),         # P2 (resident)
                pl.BlockSpec((D2, 1), full, **res_kw),                 # folded b1
                pl.BlockSpec((dim_out, D2), full, **res_kw),           # W2^T
                pl.BlockSpec((dim_out, 1), full, **res_kw),            # b2
            ],
            out_specs=pl.BlockSpec((dim_out, tile_e), lambda i: (0, i)),
        ),
        compiler_params=pltpu.CompilerParams(
            dimension_semantics=("parallel",)),
    )(idx, p1, p2, b1_t, w2_t, b2_t)


def postprocess_forward(node_feature, edge_label_index, edge_label, params,
                        *, tile_e=512, operands=None):
    """Fused Postprocess head: gather + concat-Linear + BN + ReLU + Linear.

    tile_e: edge tile (lane) width.  Sweep 512/1024; keep it a multiple of 256
    for v6e/v7x MXU N-width, and keep n_tiles >= 2 (preferably even) on v7x so
    the parallel edge axis splits across both TensorCores.
    """
    assert tile_e % 128 == 0, "edge tile must be lane-aligned"
    if operands is None:
        operands = prepare_postprocess_operands(node_feature, params)
    p1, p2, b1_t, w2_t, b2_t = operands

    # Pad the edge axis to whole tiles (padding gathers nothing: index 0's
    # rows, sliced off below) -> ragged E without in-kernel masking.
    E = edge_label_index.shape[1]
    n_tiles = pl.cdiv(E, tile_e)
    E_pad = n_tiles * tile_e
    idx = edge_label_index.astype(jnp.int32)
    if E_pad != E:
        idx = jnp.pad(idx, ((0, 0), (0, E_pad - E)))

    try:
        out_t = _postprocess_call(idx, p1, p2, b1_t, w2_t, b2_t,
                                  tile_e=tile_e, n_tiles=n_tiles,
                                  resident_mode=pl.Buffered(1))
    except Exception:
        # Older JAX without pipeline_mode / single-buffer support: the only
        # cost is one extra (never-refilled) VMEM buffer per resident operand.
        out_t = _postprocess_call(idx, p1, p2, b1_t, w2_t, b2_t,
                                  tile_e=tile_e, n_tiles=n_tiles,
                                  resident_mode=None)

    pred = out_t[:, :E].T                                        # (E, dim_out)
    return pred, edge_label


def init_params(key, dim_in, dim_out):
    D2 = 2 * dim_in
    k1, k2, k3, k4, k5, k6, k7 = jax.random.split(key, 7)
    w1 = jax.random.normal(k1, (D2, D2), jnp.float32) * 0.05
    b1 = jax.random.normal(k2, (D2,), jnp.float32) * 0.01
    gamma = 1.0 + 0.1 * jax.random.normal(k3, (D2,), jnp.float32)
    beta = 0.1 * jax.random.normal(k4, (D2,), jnp.float32)
    run_mean = 0.1 * jax.random.normal(k5, (D2,), jnp.float32)
    run_var = jnp.abs(1.0 + 0.1 * jax.random.normal(k6, (D2,), jnp.float32))
    eps = jnp.float32(1e-5)
    w2 = jax.random.normal(k7, (D2, dim_out), jnp.float32) * 0.05
    b2 = jnp.zeros((dim_out,), jnp.float32)
    return (w1, b1, gamma, beta, run_mean, run_var, eps, w2, b2)


if __name__ == "__main__":
    dim_in = 32        # per-node hidden size (D)
    dim_out = 1        # binary edge prediction
    num_nodes = 64
    num_edges = 1000   # NOT a multiple of tile_e (ragged tail); 2 tiles of 512

    key = jax.random.PRNGKey(0)
    kf, ki, kl, kp = jax.random.split(key, 4)

    node_feature = jax.random.normal(kf, (num_nodes, dim_in), jnp.float32)
    edge_label_index = jax.random.randint(ki, (2, num_edges), 0, num_nodes)
    edge_label = jax.random.randint(kl, (num_edges,), 0, 2).astype(jnp.float32)

    params = init_params(kp, dim_in, dim_out)

    # Operands prepared once; reusable across many edge batches.
    operands = prepare_postprocess_operands(node_feature, params)
    pred, label = postprocess_forward(node_feature, edge_label_index,
                                      edge_label, params, tile_e=512,
                                      operands=operands)
    jax.block_until_ready(pred)
    jax.block_until_ready(label)

    # Reference check in plain JAX (unfused eval-mode forward).
    w1, b1, gamma, beta, rm, rv, eps, w2, b2 = params
    v1 = node_feature[edge_label_index[0]]
    v2 = node_feature[edge_label_index[1]]
    x = jnp.concatenate([v1, v2], axis=-1)
    h = x @ w1 + b1
    h = (h - rm) / jnp.sqrt(rv + eps) * gamma + beta
    h = jnp.maximum(h, 0.0)
    ref = h @ w2 + b2
    assert pred.shape == ref.shape, (pred.shape, ref.shape)
    assert jnp.allclose(pred, ref, atol=1e-3, rtol=1e-3), float(
        jnp.max(jnp.abs(pred - ref)))
    assert jnp.array_equal(label, edge_label)

    print("KERNEL_OK")
</pallas_src>

<mosaic_0001>
module attributes {stable_mosaic.version = 11 : i64} {
  func.func @postprocess_kernel(%arg0: i32, %arg1: memref<2x512xi32, #tpu.memory_space<vmem>>, %arg2: memref<64x64xf32, #tpu.memory_space<vmem>>, %arg3: memref<64x64xf32, #tpu.memory_space<vmem>>, %arg4: memref<64x1xf32, #tpu.memory_space<vmem>>, %arg5: memref<1x64xf32, #tpu.memory_space<vmem>>, %arg6: memref<1x1xf32, #tpu.memory_space<vmem>>, %arg7: memref<1x512xf32, #tpu.memory_space<vmem>>) attributes {dimension_semantics = [#tpu.dimension_semantics<parallel>], iteration_bounds = array<i64: 2>, scalar_prefetch = 0 : i64, scratch_operands = 0 : i64, tpu.core_type = #tpu.core_type<tc>, window_params = [{transform_indices = @transform_0, window_bounds = array<i64: 2, 512>}, {pipeline_mode = #tpu.pipeline_mode<synchronous>, transform_indices = @transform_1, window_bounds = array<i64: 64, 64>}, {pipeline_mode = #tpu.pipeline_mode<synchronous>, transform_indices = @transform_2, window_bounds = array<i64: 64, 64>}, {pipeline_mode = #tpu.pipeline_mode<synchronous>, transform_indices = @transform_3, window_bounds = array<i64: 64, 1>}, {pipeline_mode = #tpu.pipeline_mode<synchronous>, transform_indices = @transform_4, window_bounds = array<i64: 1, 64>}, {pipeline_mode = #tpu.pipeline_mode<synchronous>, transform_indices = @transform_5, window_bounds = array<i64: 1, 1>}, {transform_indices = @transform_6, window_bounds = array<i64: 1, 512>}]} {
    %c0 = arith.constant 0 : index
    %c0_0 = arith.constant 0 : index
    %0 = vector.load %arg1[%c0, %c0_0] : memref<2x512xi32, #tpu.memory_space<vmem>>, vector<2x512xi32>
    %1 = tpu.iota {dimensions = array<i32: 0>} : vector<64x1xi32>
    %2 = vector.extract_strided_slice %0 {offsets = [0, 0], sizes = [1, 512], strides = [1, 1]} : vector<2x512xi32> to vector<1x512xi32>
    %3 = vector.broadcast %1 : vector<64x1xi32> to vector<64x512xi32>
    %4 = vector.broadcast %2 : vector<1x512xi32> to vector<64x512xi32>
    %5 = arith.cmpi eq, %3, %4 : vector<64x512xi32>
    %6 = arith.extui %5 : vector<64x512xi1> to vector<64x512xi32>
    %7 = arith.sitofp %6 : vector<64x512xi32> to vector<64x512xf32>
    %c0_1 = arith.constant 0 : index
    %c0_2 = arith.constant 0 : index
    %8 = vector.load %arg2[%c0_1, %c0_2] : memref<64x64xf32, #tpu.memory_space<vmem>>, vector<64x64xf32>
    %cst = arith.constant dense<0.000000e+00> : vector<64x512xf32>
    %9 = tpu.matmul %8, %7, %cst {dimension_numbers = #tpu.dot_dimension_numbers<[1], [0], [0], [1], [0, 0, 1, 1], [], []>} : vector<64x64xf32>, vector<64x512xf32>, vector<64x512xf32> -> vector<64x512xf32>
    %10 = vector.extract_strided_slice %0 {offsets = [1, 0], sizes = [1, 512], strides = [1, 1]} : vector<2x512xi32> to vector<1x512xi32>
    %11 = vector.broadcast %1 : vector<64x1xi32> to vector<64x512xi32>
    %12 = vector.broadcast %10 : vector<1x512xi32> to vector<64x512xi32>
    %13 = arith.cmpi eq, %11, %12 : vector<64x512xi32>
    %14 = arith.extui %13 : vector<64x512xi1> to vector<64x512xi32>
    %15 = arith.sitofp %14 : vector<64x512xi32> to vector<64x512xf32>
    %c0_3 = arith.constant 0 : index
    %c0_4 = arith.constant 0 : index
    %16 = vector.load %arg3[%c0_3, %c0_4] : memref<64x64xf32, #tpu.memory_space<vmem>>, vector<64x64xf32>
    %cst_5 = arith.constant dense<0.000000e+00> : vector<64x512xf32>
    %17 = tpu.matmul %16, %15, %cst_5 {dimension_numbers = #tpu.dot_dimension_numbers<[1], [0], [0], [1], [0, 0, 1, 1], [], []>} : vector<64x64xf32>, vector<64x512xf32>, vector<64x512xf32> -> vector<64x512xf32>
    %18 = arith.addf %9, %17 : vector<64x512xf32>
    %c0_6 = arith.constant 0 : index
    %c0_7 = arith.constant 0 : index
    %19 = vector.load %arg4[%c0_6, %c0_7] : memref<64x1xf32, #tpu.memory_space<vmem>>, vector<64x1xf32>
    %20 = vector.broadcast %19 : vector<64x1xf32> to vector<64x512xf32>
    %21 = arith.addf %18, %20 : vector<64x512xf32>
    %cst_8 = arith.constant 0.000000e+00 : f32
    %22 = vector.broadcast %cst_8 : f32 to vector<64x512xf32>
    %23 = arith.maximumf %21, %22 : vector<64x512xf32>
    %c0_9 = arith.constant 0 : index
    %c0_10 = arith.constant 0 : index
    %24 = vector.load %arg5[%c0_9, %c0_10] : memref<1x64xf32, #tpu.memory_space<vmem>>, vector<1x64xf32>
    %cst_11 = arith.constant dense<0.000000e+00> : vector<1x512xf32>
    %25 = tpu.matmul %24, %23, %cst_11 {dimension_numbers = #tpu.dot_dimension_numbers<[1], [0], [0], [1], [0, 0, 1, 1], [], []>} : vector<1x64xf32>, vector<64x512xf32>, vector<1x512xf32> -> vector<1x512xf32>
    %c0_12 = arith.constant 0 : index
    %c0_13 = arith.constant 0 : index
    %26 = vector.load %arg6[%c0_12, %c0_13] : memref<1x1xf32, #tpu.memory_space<vmem>>, vector<1x1xf32>
    %27 = vector.broadcast %26 : vector<1x1xf32> to vector<1x512xf32>
    %28 = arith.addf %25, %27 : vector<1x512xf32>
    %c0_14 = arith.constant 0 : index
    %c0_15 = arith.constant 0 : index
    %29 = vector.load %arg7[%c0_14, %c0_15] : memref<1x512xf32, #tpu.memory_space<vmem>>, vector<1x512xf32>
    tpu.vector_store %arg7[%c0_14, %c0_15], %28 {strides = array<i32>} : memref<1x512xf32, #tpu.memory_space<vmem>>, vector<1x512xf32>,
    return
  }
  func.func @transform_0(%arg0: i32) -> (i32, i32) {
    %c0_i32 = arith.constant 0 : i32
    %c0_i32_0 = arith.constant 0 : i32
    return %c0_i32, %arg0 : i32, i32
  }
  func.func @transform_1(%arg0: i32) -> (i32, i32) {
    %c0_i32 = arith.constant 0 : i32
    %c0_i32_0 = arith.constant 0 : i32
    %c0_i32_1 = arith.constant 0 : i32
    return %c0_i32, %c0_i32_0 : i32, i32
  }
  func.func @transform_2(%arg0: i32) -> (i32, i32) {
    %c0_i32 = arith.constant 0 : i32
    %c0_i32_0 = arith.constant 0 : i32
    %c0_i32_1 = arith.constant 0 : i32
    return %c0_i32, %c0_i32_0 : i32, i32
  }
  func.func @transform_3(%arg0: i32) -> (i32, i32) {
    %c0_i32 = arith.constant 0 : i32
    %c0_i32_0 = arith.constant 0 : i32
    %c0_i32_1 = arith.constant 0 : i32
    return %c0_i32, %c0_i32_0 : i32, i32
  }
  func.func @transform_4(%arg0: i32) -> (i32, i32) {
    %c0_i32 = arith.constant 0 : i32
    %c0_i32_0 = arith.constant 0 : i32
    %c0_i32_1 = arith.constant 0 : i32
    return %c0_i32, %c0_i32_0 : i32, i32
  }
  func.func @transform_5(%arg0: i32) -> (i32, i32) {
    %c0_i32 = arith.constant 0 : i32
    %c0_i32_0 = arith.constant 0 : i32
    %c0_i32_1 = arith.constant 0 : i32
    return %c0_i32, %c0_i32_0 : i32, i32
  }
  func.func @transform_6(%arg0: i32) -> (i32, i32) {
    %c0_i32 = arith.constant 0 : i32
    %c0_i32_0 = arith.constant 0 : i32
    return %c0_i32, %arg0 : i32, i32
  }
}

module attributes {stable_mosaic.version = 11 : i64} {
  func.func @postprocess_kernel(%arg0: i32, %arg1: memref<2x512xi32, #tpu.memory_space<vmem>>, %arg2: memref<64x64xf32, #tpu.memory_space<vmem>>, %arg3: memref<64x64xf32, #tpu.memory_space<vmem>>, %arg4: memref<64x1xf32, #tpu.memory_space<vmem>>, %arg5: memref<1x64xf32, #tpu.memory_space<vmem>>, %arg6: memref<1x1xf32, #tpu.memory_space<vmem>>, %arg7: memref<1x512xf32, #tpu.memory_space<vmem>>) attributes {dimension_semantics = [#tpu.dimension_semantics<parallel>], iteration_bounds = array<i64: 2>, scalar_prefetch = 0 : i64, scratch_operands = 0 : i64, tpu.core_type = #tpu.core_type<tc>, window_params = [{transform_indices = @transform_0, window_bounds = array<i64: 2, 512>}, {pipeline_mode = #tpu.pipeline_mode<synchronous>, transform_indices = @transform_1, window_bounds = array<i64: 64, 64>}, {pipeline_mode = #tpu.pipeline_mode<synchronous>, transform_indices = @transform_2, window_bounds = array<i64: 64, 64>}, {pipeline_mode = #tpu.pipeline_mode<synchronous>, transform_indices = @transform_3, window_bounds = array<i64: 64, 1>}, {pipeline_mode = #tpu.pipeline_mode<synchronous>, transform_indices = @transform_4, window_bounds = array<i64: 1, 64>}, {pipeline_mode = #tpu.pipeline_mode<synchronous>, transform_indices = @transform_5, window_bounds = array<i64: 1, 1>}, {transform_indices = @transform_6, window_bounds = array<i64: 1, 512>}]} {
    %c0 = arith.constant 0 : index
    %c0_0 = arith.constant 0 : index
    %0 = vector.load %arg1[%c0, %c0_0] : memref<2x512xi32, #tpu.memory_space<vmem>>, vector<2x512xi32>
    %1 = tpu.iota {dimensions = array<i32: 0>} : vector<64x1xi32>
    %2 = vector.extract_strided_slice %0 {offsets = [0, 0], sizes = [1, 512], strides = [1, 1]} : vector<2x512xi32> to vector<1x512xi32>
    %3 = vector.broadcast %1 : vector<64x1xi32> to vector<64x512xi32>
    %4 = vector.broadcast %2 : vector<1x512xi32> to vector<64x512xi32>
    %5 = arith.cmpi eq, %3, %4 : vector<64x512xi32>
    %6 = arith.extui %5 : vector<64x512xi1> to vector<64x512xi32>
    %7 = arith.sitofp %6 : vector<64x512xi32> to vector<64x512xf32>
    %c0_1 = arith.constant 0 : index
    %c0_2 = arith.constant 0 : index
    %8 = vector.load %arg2[%c0_1, %c0_2] : memref<64x64xf32, #tpu.memory_space<vmem>>, vector<64x64xf32>
    %cst = arith.constant dense<0.000000e+00> : vector<64x512xf32>
    %9 = tpu.matmul %8, %7, %cst {dimension_numbers = #tpu.dot_dimension_numbers<[1], [0], [0], [1], [0, 0, 1, 1], [], []>} : vector<64x64xf32>, vector<64x512xf32>, vector<64x512xf32> -> vector<64x512xf32>
    %10 = vector.extract_strided_slice %0 {offsets = [1, 0], sizes = [1, 512], strides = [1, 1]} : vector<2x512xi32> to vector<1x512xi32>
    %11 = vector.broadcast %1 : vector<64x1xi32> to vector<64x512xi32>
    %12 = vector.broadcast %10 : vector<1x512xi32> to vector<64x512xi32>
    %13 = arith.cmpi eq, %11, %12 : vector<64x512xi32>
    %14 = arith.extui %13 : vector<64x512xi1> to vector<64x512xi32>
    %15 = arith.sitofp %14 : vector<64x512xi32> to vector<64x512xf32>
    %c0_3 = arith.constant 0 : index
    %c0_4 = arith.constant 0 : index
    %16 = vector.load %arg3[%c0_3, %c0_4] : memref<64x64xf32, #tpu.memory_space<vmem>>, vector<64x64xf32>
    %cst_5 = arith.constant dense<0.000000e+00> : vector<64x512xf32>
    %17 = tpu.matmul %16, %15, %cst_5 {dimension_numbers = #tpu.dot_dimension_numbers<[1], [0], [0], [1], [0, 0, 1, 1], [], []>} : vector<64x64xf32>, vector<64x512xf32>, vector<64x512xf32> -> vector<64x512xf32>
    %18 = arith.addf %9, %17 : vector<64x512xf32>
    %c0_6 = arith.constant 0 : index
    %c0_7 = arith.constant 0 : index
    %19 = vector.load %arg4[%c0_6, %c0_7] : memref<64x1xf32, #tpu.memory_space<vmem>>, vector<64x1xf32>
    %20 = vector.broadcast %19 : vector<64x1xf32> to vector<64x512xf32>
    %21 = arith.addf %18, %20 : vector<64x512xf32>
    %cst_8 = arith.constant 0.000000e+00 : f32
    %22 = vector.broadcast %cst_8 : f32 to vector<64x512xf32>
    %23 = arith.maximumf %21, %22 : vector<64x512xf32>
    %c0_9 = arith.constant 0 : index
    %c0_10 = arith.constant 0 : index
    %24 = vector.load %arg5[%c0_9, %c0_10] : memref<1x64xf32, #tpu.memory_space<vmem>>, vector<1x64xf32>
    %cst_11 = arith.constant dense<0.000000e+00> : vector<1x512xf32>
    %25 = tpu.matmul %24, %23, %cst_11 {dimension_numbers = #tpu.dot_dimension_numbers<[1], [0], [0], [1], [0, 0, 1, 1], [], []>} : vector<1x64xf32>, vector<64x512xf32>, vector<1x512xf32> -> vector<1x512xf32>
    %c0_12 = arith.constant 0 : index
    %c0_13 = arith.constant 0 : index
    %26 = vector.load %arg6[%c0_12, %c0_13] : memref<1x1xf32, #tpu.memory_space<vmem>>, vector<1x1xf32>
    %27 = vector.broadcast %26 : vector<1x1xf32> to vector<1x512xf32>
    %28 = arith.addf %25, %27 : vector<1x512xf32>
    %c0_14 = arith.constant 0 : index
    %c0_15 = arith.constant 0 : index
    %29 = vector.load %arg7[%c0_14, %c0_15] : memref<1x512xf32, #tpu.memory_space<vmem>>, vector<1x512xf32>
    tpu.vector_store %arg7[%c0_14, %c0_15], %28 {strides = array<i32>} : memref<1x512xf32, #tpu.memory_space<vmem>>, vector<1x512xf32>,
    return
  }
  func.func @transform_0(%arg0: i32) -> (i32, i32) {
    %c0_i32 = arith.constant 0 : i32
    %c0_i32_0 = arith.constant 0 : i32
    return %c0_i32, %arg0 : i32, i32
  }
  func.func @transform_1(%arg0: i32) -> (i32, i32) {
    %c0_i32 = arith.constant 0 : i32
    %c0_i32_0 = arith.constant 0 : i32
    %c0_i32_1 = arith.constant 0 : i32
    return %c0_i32, %c0_i32_0 : i32, i32
  }
  func.func @transform_2(%arg0: i32) -> (i32, i32) {
    %c0_i32 = arith.constant 0 : i32
    %c0_i32_0 = arith.constant 0 : i32
    %c0_i32_1 = arith.constant 0 : i32
    return %c0_i32, %c0_i32_0 : i32, i32
  }
  func.func @transform_3(%arg0: i32) -> (i32, i32) {
    %c0_i32 = arith.constant 0 : i32
    %c0_i32_0 = arith.constant 0 : i32
    %c0_i32_1 = arith.constant 0 : i32
    return %c0_i32, %c0_i32_0 : i32, i32
  }
  func.func @transform_4(%arg0: i32) -> (i32, i32) {
    %c0_i32 = arith.constant 0 : i32
    %c0_i32_0 = arith.constant 0 : i32
    %c0_i32_1 = arith.constant 0 : i32
    return %c0_i32, %c0_i32_0 : i32, i32
  }
  func.func @transform_5(%arg0: i32) -> (i32, i32) {
    %c0_i32 = arith.constant 0 : i32
    %c0_i32_0 = arith.constant 0 : i32
    %c0_i32_1 = arith.constant 0 : i32
    return %c0_i32, %c0_i32_0 : i32, i32
  }
  func.func @transform_6(%arg0: i32) -> (i32, i32) {
    %c0_i32 = arith.constant 0 : i32
    %c0_i32_0 = arith.constant 0 : i32
    return %c0_i32, %arg0 : i32, i32
  }
}

</mosaic_0001>

<llo_original>
// kernel: tpu_custom_call.1
$region0: #{tpu_custom_call.1}
  #allocation0 [shape = 'u32[]', space=smem, size = 0x4, offset = 0x4, fixed_abs, tag = 'smem constant byte address 0x4 - core index']
  #allocation1 [shape = 'u32[144,128]{1,0:T(1,128)}', space=vmem, size = 0x12000, scoped, tag = 'internal scratch']
  #allocation2 [shape = 'f32[1,1]{1,0:T(1,128)S(1)}', space=vmem, size = 0x200, scoped, tag = 'scoped memory for tpu_custom_call.1']
  %s0 = inlined_call_operand.hbm [shape: s32[2,1024], index: 0, kind: input, shape index: {}]
  %s1 = inlined_call_operand.vmem [shape: f32[64,64], index: 1, kind: input, shape index: {}]
  %s2 = inlined_call_operand.hbm [shape: f32[64,64], index: 2, kind: input, shape index: {}]
  %s3 = inlined_call_operand.vmem [shape: f32[64,1], index: 3, kind: input, shape index: {}]
  %s4 = inlined_call_operand.vmem [shape: f32[1,64], index: 4, kind: input, shape index: {}]
  %s5 = inlined_call_operand.<no memory space> [shape: f32[1,1], index: 5, kind: input, shape index: {}]
  %s6 = inlined_call_operand.hbm [shape: f32[1,1024], index: 6, kind: output, shape index: {}]
  %s7 = sld [smem:[#allocation0]]
  $region65: #{tpu_custom_call.1} parent=0
    _
  %s9 = ssub.s32 1, %s7
  %s10 = scalar_select 0, %s9, %s7
  %v11 = vstv %s5
  %12 = vst [vmem:[#allocation2] sm:$0x1] %v11
  $region1: #{tpu_custom_call.1} parent=0
    #allocation3 [shape = 'u8[8192]{0}', space=vmem, size = 0x2000, scoped, tag = 'input window, operand 0']
    #allocation4 [shape = 's32[2]{0}', space=sflag, size = 0x8, scoped, tag = 'scoped memory for tpu_custom_call.1']
    #allocation5 [shape = 's32[2]{0}', space=sflag, size = 0x8, scoped, tag = 'scoped memory for tpu_custom_call.1']
    #allocation6 [shape = 'u8[32768]{0}', space=vmem, size = 0x8000, scoped, tag = 'input window, operand 2, single buffered']
    #allocation7 [shape = 's32[1]{0}', space=sflag, size = 0x4, scoped, tag = 'scoped memory for tpu_custom_call.1']
    #allocation8 [shape = 'u8[4096]{0}', space=vmem, size = 0x1000, scoped, tag = 'output window, operand 0']
    %13 = vsyncpa [#allocation4], 0
    %s14 = scalar_lea.sflag [#allocation4], 1
    %15 = vsyncpa %s14, 0
    %16 = vsyncpa [#allocation7], 0
    %17 = vsyncpa [#allocation5], 0
    %s18 = scalar_lea.sflag [#allocation5], 1
    %19 = vsyncpa %s18, 0
    loop: start=0, step=1, limit=4
    $region2: #{tpu_custom_call.1} parent=1 // loop_pre_header
      _
    $region3: #{tpu_custom_call.1} parent=1 // loop_header
      %s21 = sphi 0, %s25
      %p22 = scmp.ge.s32.totalorder %s21, 4
      %s31 = sphi 0, %s33
      %s34 = sphi 0, %s31
      %s35 = sphi 0, %s34
      %s51 = sphi 0, %s35
      %s55 = sphi 0, %s55
      %s57 = sphi 0, %s55
      %s58 = sphi 0, %s57
      %s72 = sphi 0, %s58
      %s76 = sphi 0, %s76
      %s78 = sphi 0, %s76
      %s79 = sphi 0, %s78
      %s93 = sphi 0, %s79
      %s97 = sphi 0, %s97
      %s99 = sphi 0, %s97
      %s100 = sphi 0, %s99
      %s114 = sphi 0, %s100
      %s118 = sphi 0, %s118
      %s120 = sphi 0, %s118
      %s121 = sphi 0, %s120
      %s135 = sphi 0, %s121
      %s139 = sphi 0, %s139
      %s141 = sphi 0, %s139
      %s142 = sphi 0, %s141
      %s156 = sphi 0, %s142
      %s162 = sphi 0, %s164
      %s165 = sphi 0, %s162
      %s166 = sphi 0, %s165
      %s182 = sphi 0, %s166
    $region4: #{tpu_custom_call.1} parent=1 // loop_header_branch
      %24 = sbr.rel (%p22) target = $region8
    $region5: #{tpu_custom_call.1} parent=1 // loop_body
      %s26 = ssub.s32 %s21, 1
      %s27 = ssub.s32 %s21, 2
      %s28 = sadd.s32 %s21, 1
      %s29 = ssub.s32 %s21, %s28
      %p30 = scmp.eq.s32.totalorder %s29, 0
      %s32 = sadd.s32 %s31, 1
      %s33 = scalar_select %p30, %s31, %s32
      %p36 = pneg %p30
      %p37 = scmp.eq.s32.totalorder %s21, 1
      %p38 = por %p36, %p37
      %p39 = scmp.ne.s32.totalorder %s31, %s34
      %p40 = scmp.eq.s32.totalorder %s21, 0
      %p41 = por %p39, %p40
      %p42 = scmp.ne.s32.totalorder %s31, %s34
      %p43 = scmp.eq.s32.totalorder %s26, 1
      %p44 = por %p42, %p43
      %p45 = scmp.ne.s32.totalorder %s34, %s35
      %p46 = scmp.eq.s32.totalorder %s26, 0
      %p47 = por %p45, %p46
      %p48 = scmp.ne.s32.totalorder %s34, %s35
      %p49 = scmp.eq.s32.totalorder %s27, 1
      %p50 = por %p48, %p49
      %p52 = scmp.ne.s32.totalorder %s35, %s51
      %p53 = scmp.eq.s32.totalorder %s27, 0
      %p54 = por %p52, %p53
      %s56 = sadd.s32 %s55, 1
      %p59 = scmp.eq.s32.totalorder %s21, 1
      %p60 = scmp.ne.s32.totalorder %s55, %s57
      %p61 = scmp.eq.s32.totalorder %s21, 0
      %p62 = por %p60, %p61
      %p63 = scmp.ne.s32.totalorder %s55, %s57
      %p64 = scmp.eq.s32.totalorder %s26, 1
      %p65 = por %p63, %p64
      %p66 = scmp.ne.s32.totalorder %s57, %s58
      %p67 = scmp.eq.s32.totalorder %s26, 0
      %p68 = por %p66, %p67
      %p69 = scmp.ne.s32.totalorder %s57, %s58
      %p70 = scmp.eq.s32.totalorder %s27, 1
      %p71 = por %p69, %p70
      %p73 = scmp.ne.s32.totalorder %s58, %s72
      %p74 = scmp.eq.s32.totalorder %s27, 0
      %p75 = por %p73, %p74
      %s77 = sadd.s32 %s76, 1
      %p80 = scmp.eq.s32.totalorder %s21, 1
      %p81 = scmp.ne.s32.totalorder %s76, %s78
      %p82 = scmp.eq.s32.totalorder %s21, 0
      %p83 = por %p81, %p82
      %p84 = scmp.ne.s32.totalorder %s76, %s78
      %p85 = scmp.eq.s32.totalorder %s26, 1
      %p86 = por %p84, %p85
      %p87 = scmp.ne.s32.totalorder %s78, %s79
      %p88 = scmp.eq.s32.totalorder %s26, 0
      %p89 = por %p87, %p88
      %p90 = scmp.ne.s32.totalorder %s78, %s79
      %p91 = scmp.eq.s32.totalorder %s27, 1
      %p92 = por %p90, %p91
      %p94 = scmp.ne.s32.totalorder %s79, %s93
      %p95 = scmp.eq.s32.totalorder %s27, 0
      %p96 = por %p94, %p95
      %s98 = sadd.s32 %s97, 1
      %p101 = scmp.eq.s32.totalorder %s21, 1
      %p102 = scmp.ne.s32.totalorder %s97, %s99
      %p103 = scmp.eq.s32.totalorder %s21, 0
      %p104 = por %p102, %p103
      %p105 = scmp.ne.s32.totalorder %s97, %s99
      %p106 = scmp.eq.s32.totalorder %s26, 1
      %p107 = por %p105, %p106
      %p108 = scmp.ne.s32.totalorder %s99, %s100
      %p109 = scmp.eq.s32.totalorder %s26, 0
      %p110 = por %p108, %p109
      %p111 = scmp.ne.s32.totalorder %s99, %s100
      %p112 = scmp.eq.s32.totalorder %s27, 1
      %p113 = por %p111, %p112
      %p115 = scmp.ne.s32.totalorder %s100, %s114
      %p116 = scmp.eq.s32.totalorder %s27, 0
      %p117 = por %p115, %p116
      %s119 = sadd.s32 %s118, 1
      %p122 = scmp.eq.s32.totalorder %s21, 1
      %p123 = scmp.ne.s32.totalorder %s118, %s120
      %p124 = scmp.eq.s32.totalorder %s21, 0
      %p125 = por %p123, %p124
      %p126 = scmp.ne.s32.totalorder %s118, %s120
      %p127 = scmp.eq.s32.totalorder %s26, 1
      %p128 = por %p126, %p127
      %p129 = scmp.ne.s32.totalorder %s120, %s121
      %p130 = scmp.eq.s32.totalorder %s26, 0
      %p131 = por %p129, %p130
      %p132 = scmp.ne.s32.totalorder %s120, %s121
      %p133 = scmp.eq.s32.totalorder %s27, 1
      %p134 = por %p132, %p133
      %p136 = scmp.ne.s32.totalorder %s121, %s135
      %p137 = scmp.eq.s32.totalorder %s27, 0
      %p138 = por %p136, %p137
      %s140 = sadd.s32 %s139, 1
      %p143 = scmp.eq.s32.totalorder %s21, 1
      %p144 = scmp.ne.s32.totalorder %s139, %s141
      %p145 = scmp.eq.s32.totalorder %s21, 0
      %p146 = por %p144, %p145
      %p147 = scmp.ne.s32.totalorder %s139, %s141
      %p148 = scmp.eq.s32.totalorder %s26, 1
      %p149 = por %p147, %p148
      %p150 = scmp.ne.s32.totalorder %s141, %s142
      %p151 = scmp.eq.s32.totalorder %s26, 0
      %p152 = por %p150, %p151
      %p153 = scmp.ne.s32.totalorder %s141, %s142
      %p154 = scmp.eq.s32.totalorder %s27, 1
      %p155 = por %p153, %p154
      %p157 = scmp.ne.s32.totalorder %s142, %s156
      %p158 = scmp.eq.s32.totalorder %s27, 0
      %p159 = por %p157, %p158
      %s160 = ssub.s32 %s21, %s28
      %p161 = scmp.eq.s32.totalorder %s160, 0
      %s163 = sadd.s32 %s162, 1
      %s164 = scalar_select %p161, %s162, %s163
      %p167 = pneg %p161
      %p168 = scmp.eq.s32.totalorder %s21, 1
      %p169 = por %p167, %p168
      %p170 = scmp.ne.s32.totalorder %s162, %s165
      %p171 = scmp.eq.s32.totalorder %s21, 0
      %p172 = por %p170, %p171
      %p173 = scmp.ne.s32.totalorder %s162, %s165
      %p174 = scmp.eq.s32.totalorder %s26, 1
      %p175 = por %p173, %p174
      %p176 = scmp.ne.s32.totalorder %s165, %s166
      %p177 = scmp.eq.s32.totalorder %s26, 0
      %p178 = por %p176, %p177
      %p179 = scmp.ne.s32.totalorder %s165, %s166
      %p180 = scmp.eq.s32.totalorder %s27, 1
      %p181 = por %p179, %p180
      %p183 = scmp.ne.s32.totalorder %s166, %s182
      %p184 = scmp.eq.s32.totalorder %s27, 0
      %p185 = por %p183, %p184
      %p186 = scmp.le.s32.totalorder 1, %s21
      %p187 = scmp.lt.s32.totalorder %s21, 3
      %p188 = pnand %p186, %p187
      %p189 = pneg %p188
      // Predicated region
      $region9: #{tpu_custom_call.1} parent=5 // pred_check
        _
      $region10: #{tpu_custom_call.1} parent=5 // pred_check_branch
        %191 = sbr.rel (%p188) target = $region12
      $region11: #{tpu_custom_call.1} parent=5 // pred_region
        %s192 = ssub.s32 %s21, 1
        // Predicated region
        $region13: #{tpu_custom_call.1} parent=11 // pred_check
          %p193 = pneg %p68
        $region14: #{tpu_custom_call.1} parent=11 // pred_check_branch
          %195 = sbr.rel (%p193) target = $region16
        $region15: #{tpu_custom_call.1} parent=11 // pred_region
          _
        $region16: #{tpu_custom_call.1} parent=11 // pred_fallthru
          _
        // Predicated region
        $region17: #{tpu_custom_call.1} parent=11 // pred_check
          %p196 = pneg %p89
        $region18: #{tpu_custom_call.1} parent=11 // pred_check_branch
          %198 = sbr.rel (%p196) target = $region20
        $region19: #{tpu_custom_call.1} parent=11 // pred_region
          %s200 = ssub.s32 1024, 1024
          %201 = vsyncadd [#allocation7], %s200
          %s202 = sshll.u32 [#allocation6], 4
          %s203 = int_to_ptr.vmem [resolvable:$true] %s202
          %208 = dma.hbm_to_vmem [thread:$0]  %s2, 1024, %s203, [#allocation7], 128, 128, 8
        $region20: #{tpu_custom_call.1} parent=11 // pred_fallthru
          _
        // Predicated region
        $region21: #{tpu_custom_call.1} parent=11 // pred_check
          %p209 = pneg %p110
        $region22: #{tpu_custom_call.1} parent=11 // pred_check_branch
          %211 = sbr.rel (%p209) target = $region24
        $region23: #{tpu_custom_call.1} parent=11 // pred_region
          _
        $region24: #{tpu_custom_call.1} parent=11 // pred_fallthru
          _
        // Predicated region
        $region25: #{tpu_custom_call.1} parent=11 // pred_check
          %p212 = pneg %p131
        $region26: #{tpu_custom_call.1} parent=11 // pred_check_branch
          %214 = sbr.rel (%p212) target = $region28
        $region27: #{tpu_custom_call.1} parent=11 // pred_region
          _
        $region28: #{tpu_custom_call.1} parent=11 // pred_fallthru
          _
        // Predicated region
        $region29: #{tpu_custom_call.1} parent=11 // pred_check
          %p215 = pneg %p152
        $region30: #{tpu_custom_call.1} parent=11 // pred_check_branch
          %217 = sbr.rel (%p215) target = $region32
        $region31: #{tpu_custom_call.1} parent=11 // pred_region
          _
        $region32: #{tpu_custom_call.1} parent=11 // pred_fallthru
          _
      $region12: #{tpu_custom_call.1} parent=5 // pred_fallthru
        _
      %p218 = scmp.lt.s32.totalorder %s21, 2
      // Predicated region
      $region33: #{tpu_custom_call.1} parent=5 // pred_check
        %p219 = pneg %p218
      $region34: #{tpu_custom_call.1} parent=5 // pred_check_branch
        %221 = sbr.rel (%p219) target = $region36
      $region35: #{tpu_custom_call.1} parent=5 // pred_region
        // Predicated region
        $region37: #{tpu_custom_call.1} parent=35 // pred_check
          %p222 = pneg %p41
        $region38: #{tpu_custom_call.1} parent=35 // pred_check_branch
          %224 = sbr.rel (%p222) target = $region40
        $region39: #{tpu_custom_call.1} parent=35 // pred_region
          %s225 = sand.u32 %s31, 1
          %s226 = scalar_lea.sflag [#allocation4], %s225
          %s227 = sand.u32 %s31, 1
          %s228 = smul.addr %s227, 8
          %s229 = scalar_lea.vmem [#allocation3], %s228
          %s230 = smul.u32 4, %s21
          %s232 = ssub.s32 128, 128
          %233 = vsyncadd %s226, %s232
          %s234 = smul.addr %s230, 32
          %s235 = scalar_lea.hbm %s0, %s234
          %s237 = sshll.u32 %s229, 4
          %s238 = int_to_ptr.vmem [resolvable:$true] %s237
          %240 = dma.hbm_to_vmem [thread:$0]  %s235, 128, %s238, %s226
        $region40: #{tpu_custom_call.1} parent=35 // pred_fallthru
          _
      $region36: #{tpu_custom_call.1} parent=5 // pred_fallthru
        _
      %p241 = scmp.le.s32.totalorder 1, %s21
      %p242 = scmp.lt.s32.totalorder %s21, 3
      %p243 = pnand %p241, %p242
      %p244 = pneg %p243
      // Predicated region
      $region41: #{tpu_custom_call.1} parent=5 // pred_check
        _
      $region42: #{tpu_custom_call.1} parent=5 // pred_check_branch
        %246 = sbr.rel (%p243) target = $region44
      $region43: #{tpu_custom_call.1} parent=5 // pred_region
        %s247 = ssub.s32 %s21, 1
        %s248 = sand.u32 %s34, 1
        %s249 = scalar_lea.sflag [#allocation4], %s248
        %s250 = sand.u32 %s34, 1
        %s251 = smul.addr %s250, 8
        %s252 = scalar_lea.vmem [#allocation3], %s251
        // Predicated region
        $region45: #{tpu_custom_call.1} parent=43 // pred_check
          %p253 = pneg %p47
        $region46: #{tpu_custom_call.1} parent=43 // pred_check_branch
          %255 = sbr.rel (%p253) target = $region48
        $region47: #{tpu_custom_call.1} parent=43 // pred_region
          %256 = dma.done %s249, 128
        $region48: #{tpu_custom_call.1} parent=43 // pred_fallthru
          _
        // Predicated region
        $region49: #{tpu_custom_call.1} parent=43 // pred_check
          %p257 = pneg %p89
        $region50: #{tpu_custom_call.1} parent=43 // pred_check_branch
          %259 = sbr.rel (%p257) target = $region52
        $region51: #{tpu_custom_call.1} parent=43 // pred_region
          %260 = dma.done [#allocation7], 1024
        $region52: #{tpu_custom_call.1} parent=43 // pred_fallthru
          _
        %s261 = sand.u32 %s34, 1
        %s262 = scalar_lea.sflag [#allocation4], %s261
        %s263 = sand.u32 %s34, 1
        %s264 = smul.addr %s263, 8
        %s265 = scalar_lea.vmem [#allocation3], %s264
        %p266 = pneg %p47
        %p267 = pneg %p44
        %p268 = pneg %p68
        %p269 = pneg %p65
        %p270 = pneg %p89
        %p271 = pneg %p86
        %p272 = pneg %p110
        %p273 = pneg %p107
        %p274 = pneg %p131
        %p275 = pneg %p128
        %p276 = pneg %p152
        %p277 = pneg %p149
        %p278 = pneg %p178
        %p279 = pneg %p175
        %s280 = sand.u32 %s165, 1
        %s281 = scalar_lea.sflag [#allocation5], %s280
        %s282 = sand.u32 %s165, 1
        %s283 = smul.addr %s282, 4
        %s284 = scalar_lea.vmem [#allocation8], %s283
        %s285 = smul.u32 4, %s26
        %s286 = smul.u32 4, %s26
        %v287 = vld [vmem:[%s252] sm:$0xff]
        %v288 = vlaneseq
        %v289 = vshrl.u32 %v288, 7
        %v290 = vadd.s32 %v289, 8
        %v291 = vadd.s32 %v289, 16
        %v292 = vadd.s32 %v289, 24
        %v293 = vadd.s32 %v289, 32
        %v294 = vadd.s32 %v289, 40
        %v295 = vadd.s32 %v289, 48
        %v296 = vadd.s32 %v289, 56
        %v297 = vlaneseq
        %v298 = vshrl.u32 %v297, 7
        %v299 = vsub.s32 0, %v298
        %v300 = vrot.slane %v287, %v299
        %v301 = vlaneseq
        %v302 = vshrl.u32 %v301, 7
        %v303 = vsub.s32 2, %v302
        %v304 = vrot.slane %v287, %v303
        %v305 = vlaneseq
        %v306 = vshrl.u32 %v305, 7
        %v307 = vsub.s32 4, %v306
        %v308 = vrot.slane %v287, %v307
        %v309 = vlaneseq
        %v310 = vshrl.u32 %v309, 7
        %v311 = vsub.s32 6, %v310
        %v312 = vrot.slane %v287, %v311
        %v313 = vlaneseq
        %v314 = vshrl.u32 %v313, 7
        %v315 = vsub.s32 0, %v314
        %v316 = vrot.slane %v300, %v315
        %v317 = vlaneseq
        %v318 = vshrl.u32 %v317, 7
        %v319 = vsub.s32 0, %v318
        %v320 = vrot.slane %v304, %v319
        %v321 = vlaneseq
        %v322 = vshrl.u32 %v321, 7
        %v323 = vsub.s32 0, %v322
        %v324 = vrot.slane %v308, %v323
        %v325 = vlaneseq
        %v326 = vshrl.u32 %v325, 7
        %v327 = vsub.s32 0, %v326
        %v328 = vrot.slane %v312, %v327
        %vm329 = vcmp.eq.s32.totalorder %v289, %v316
        %vm330 = vcmp.eq.s32.totalorder %v289, %v320
        %vm331 = vcmp.eq.s32.totalorder %v289, %v324
        %vm332 = vcmp.eq.s32.totalorder %v289, %v328
        %vm333 = vcmp.eq.s32.totalorder %v290, %v316
        %vm334 = vcmp.eq.s32.totalorder %v290, %v320
        %vm335 = vcmp.eq.s32.totalorder %v290, %v324
        %vm336 = vcmp.eq.s32.totalorder %v290, %v328
        %vm337 = vcmp.eq.s32.totalorder %v291, %v316
        %vm338 = vcmp.eq.s32.totalorder %v291, %v320
        %vm339 = vcmp.eq.s32.totalorder %v291, %v324
        %vm340 = vcmp.eq.s32.totalorder %v291, %v328
        %vm341 = vcmp.eq.s32.totalorder %v292, %v316
        %vm342 = vcmp.eq.s32.totalorder %v292, %v320
        %vm343 = vcmp.eq.s32.totalorder %v292, %v324
        %vm344 = vcmp.eq.s32.totalorder %v292, %v328
        %vm345 = vcmp.eq.s32.totalorder %v293, %v316
        %vm346 = vcmp.eq.s32.totalorder %v293, %v320
        %vm347 = vcmp.eq.s32.totalorder %v293, %v324
        %vm348 = vcmp.eq.s32.totalorder %v293, %v328
        %vm349 = vcmp.eq.s32.totalorder %v294, %v316
        %vm350 = vcmp.eq.s32.totalorder %v294, %v320
        %vm351 = vcmp.eq.s32.totalorder %v294, %v324
        %vm352 = vcmp.eq.s32.totalorder %v294, %v328
        %vm353 = vcmp.eq.s32.totalorder %v295, %v316
        %vm354 = vcmp.eq.s32.totalorder %v295, %v320
        %vm355 = vcmp.eq.s32.totalorder %v295, %v324
        %vm356 = vcmp.eq.s32.totalorder %v295, %v328
        %vm357 = vcmp.eq.s32.totalorder %v296, %v316
        %vm358 = vcmp.eq.s32.totalorder %v296, %v320
        %vm359 = vcmp.eq.s32.totalorder %v296, %v324
        %vm360 = vcmp.eq.s32.totalorder %v296, %v328
        %v361 = vsel %vm329, 1, 0
        %v362 = vsel %vm330, 1, 0
        %v363 = vsel %vm331, 1, 0
        %v364 = vsel %vm332, 1, 0
        %v365 = vsel %vm333, 1, 0
        %v366 = vsel %vm334, 1, 0
        %v367 = vsel %vm335, 1, 0
        %v368 = vsel %vm336, 1, 0
        %v369 = vsel %vm337, 1, 0
        %v370 = vsel %vm338, 1, 0
        %v371 = vsel %vm339, 1, 0
        %v372 = vsel %vm340, 1, 0
        %v373 = vsel %vm341, 1, 0
        %v374 = vsel %vm342, 1, 0
        %v375 = vsel %vm343, 1, 0
        %v376 = vsel %vm344, 1, 0
        %v377 = vsel %vm345, 1, 0
        %v378 = vsel %vm346, 1, 0
        %v379 = vsel %vm347, 1, 0
        %v380 = vsel %vm348, 1, 0
        %v381 = vsel %vm349, 1, 0
        %v382 = vsel %vm350, 1, 0
        %v383 = vsel %vm351, 1, 0
        %v384 = vsel %vm352, 1, 0
        %v385 = vsel %vm353, 1, 0
        %v386 = vsel %vm354, 1, 0
        %v387 = vsel %vm355, 1, 0
        %v388 = vsel %vm356, 1, 0
        %v389 = vsel %vm357, 1, 0
        %v390 = vsel %vm358, 1, 0
        %v391 = vsel %vm359, 1, 0
        %v392 = vsel %vm360, 1, 0
        %v393 = vcvt.s32.f32 %v361
        %v394 = vcvt.s32.f32 %v362
        %v395 = vcvt.s32.f32 %v363
        %v396 = vcvt.s32.f32 %v364
        %v397 = vcvt.s32.f32 %v365
        %v398 = vcvt.s32.f32 %v366
        %v399 = vcvt.s32.f32 %v367
        %v400 = vcvt.s32.f32 %v368
        %v401 = vcvt.s32.f32 %v369
        %v402 = vcvt.s32.f32 %v370
        %v403 = vcvt.s32.f32 %v371
        %v404 = vcvt.s32.f32 %v372
        %v405 = vcvt.s32.f32 %v373
        %v406 = vcvt.s32.f32 %v374
        %v407 = vcvt.s32.f32 %v375
        %v408 = vcvt.s32.f32 %v376
        %v409 = vcvt.s32.f32 %v377
        %v410 = vcvt.s32.f32 %v378
        %v411 = vcvt.s32.f32 %v379
        %v412 = vcvt.s32.f32 %v380
        %v413 = vcvt.s32.f32 %v381
        %v414 = vcvt.s32.f32 %v382
        %v415 = vcvt.s32.f32 %v383
        %v416 = vcvt.s32.f32 %v384
        %v417 = vcvt.s32.f32 %v385
        %v418 = vcvt.s32.f32 %v386
        %v419 = vcvt.s32.f32 %v387
        %v420 = vcvt.s32.f32 %v388
        %v421 = vcvt.s32.f32 %v389
        %v422 = vcvt.s32.f32 %v390
        %v423 = vcvt.s32.f32 %v391
        %v424 = vcvt.s32.f32 %v392
        %v425 = vld [vmem:[%s1] sm:$0xff]
        %v426 = vld [vmem:[%s1 + $0x8] sm:$0xff]
        %v427 = vld [vmem:[%s1 + $0x10] sm:$0xff]
        %v428 = vld [vmem:[%s1 + $0x18] sm:$0xff]
        %v429 = vld [vmem:[%s1 + $0x20] sm:$0xff]
        %v430 = vld [vmem:[%s1 + $0x28] sm:$0xff]
        %v431 = vld [vmem:[%s1 + $0x30] sm:$0xff]
        %v432 = vld [vmem:[%s1 + $0x38] sm:$0xff]
        %v433 = vlaneseq
        %v434 = vshrl.u32 %v433, 7
        %v435 = vsub.s32 1, %v434
        %v436 = vrot.slane %v287, %v435
        %v437 = vlaneseq
        %v438 = vshrl.u32 %v437, 7
        %v439 = vsub.s32 3, %v438
        %v440 = vrot.slane %v287, %v439
        %v441 = vlaneseq
        %v442 = vshrl.u32 %v441, 7
        %v443 = vsub.s32 5, %v442
        %v444 = vrot.slane %v287, %v443
        %v445 = vlaneseq
        %v446 = vshrl.u32 %v445, 7
        %v447 = vsub.s32 7, %v446
        %v448 = vrot.slane %v287, %v447
        %v449 = vlaneseq
        %v450 = vshrl.u32 %v449, 7
        %v451 = vsub.s32 1, %v450
        %v452 = vrot.slane %v436, %v451
        %v453 = vlaneseq
        %v454 = vshrl.u32 %v453, 7
        %v455 = vsub.s32 1, %v454
        %v456 = vrot.slane %v440, %v455
        %v457 = vlaneseq
        %v458 = vshrl.u32 %v457, 7
        %v459 = vsub.s32 1, %v458
        %v460 = vrot.slane %v444, %v459
        %v461 = vlaneseq
        %v462 = vshrl.u32 %v461, 7
        %v463 = vsub.s32 1, %v462
        %v464 = vrot.slane %v448, %v463
        %vm465 = vcmp.eq.s32.totalorder %v289, %v452
        %vm466 = vcmp.eq.s32.totalorder %v289, %v456
        %vm467 = vcmp.eq.s32.totalorder %v289, %v460
        %vm468 = vcmp.eq.s32.totalorder %v289, %v464
        %vm469 = vcmp.eq.s32.totalorder %v290, %v452
        %vm470 = vcmp.eq.s32.totalorder %v290, %v456
        %vm471 = vcmp.eq.s32.totalorder %v290, %v460
        %vm472 = vcmp.eq.s32.totalorder %v290, %v464
        %vm473 = vcmp.eq.s32.totalorder %v291, %v452
        %vm474 = vcmp.eq.s32.totalorder %v291, %v456
        %vm475 = vcmp.eq.s32.totalorder %v291, %v460
        %vm476 = vcmp.eq.s32.totalorder %v291, %v464
        %vm477 = vcmp.eq.s32.totalorder %v292, %v452
        %vm478 = vcmp.eq.s32.totalorder %v292, %v456
        %vm479 = vcmp.eq.s32.totalorder %v292, %v460
        %vm480 = vcmp.eq.s32.totalorder %v292, %v464
        %vm481 = vcmp.eq.s32.totalorder %v293, %v452
        %vm482 = vcmp.eq.s32.totalorder %v293, %v456
        %vm483 = vcmp.eq.s32.totalorder %v293, %v460
        %vm484 = vcmp.eq.s32.totalorder %v293, %v464
        %vm485 = vcmp.eq.s32.totalorder %v294, %v452
        %vm486 = vcmp.eq.s32.totalorder %v294, %v456
        %vm487 = vcmp.eq.s32.totalorder %v294, %v460
        %vm488 = vcmp.eq.s32.totalorder %v294, %v464
        %vm489 = vcmp.eq.s32.totalorder %v295, %v452
        %vm490 = vcmp.eq.s32.totalorder %v295, %v456
        %vm491 = vcmp.eq.s32.totalorder %v295, %v460
        %vm492 = vcmp.eq.s32.totalorder %v295, %v464
        %vm493 = vcmp.eq.s32.totalorder %v296, %v452
        %vm494 = vcmp.eq.s32.totalorder %v296, %v456
        %vm495 = vcmp.eq.s32.totalorder %v296, %v460
        %vm496 = vcmp.eq.s32.totalorder %v296, %v464
        %v497 = vsel %vm465, 1, 0
        %v498 = vsel %vm466, 1, 0
        %v499 = vsel %vm467, 1, 0
        %v500 = vsel %vm468, 1, 0
        %v501 = vsel %vm469, 1, 0
        %v502 = vsel %vm470, 1, 0
        %v503 = vsel %vm471, 1, 0
        %v504 = vsel %vm472, 1, 0
        %v505 = vsel %vm473, 1, 0
        %v506 = vsel %vm474, 1, 0
        %v507 = vsel %vm475, 1, 0
        %v508 = vsel %vm476, 1, 0
        %v509 = vsel %vm477, 1, 0
        %v510 = vsel %vm478, 1, 0
        %v511 = vsel %vm479, 1, 0
        %v512 = vsel %vm480, 1, 0
        %v513 = vsel %vm481, 1, 0
        %v514 = vsel %vm482, 1, 0
        %v515 = vsel %vm483, 1, 0
        %v516 = vsel %vm484, 1, 0
        %v517 = vsel %vm485, 1, 0
        %v518 = vsel %vm486, 1, 0
        %v519 = vsel %vm487, 1, 0
        %v520 = vsel %vm488, 1, 0
        %v521 = vsel %vm489, 1, 0
        %v522 = vsel %vm490, 1, 0
        %v523 = vsel %vm491, 1, 0
        %v524 = vsel %vm492, 1, 0
        %v525 = vsel %vm493, 1, 0
        %v526 = vsel %vm494, 1, 0
        %v527 = vsel %vm495, 1, 0
        %v528 = vsel %vm496, 1, 0
        %v529 = vcvt.s32.f32 %v497
        %v530 = vcvt.s32.f32 %v498
        %v531 = vcvt.s32.f32 %v499
        %v532 = vcvt.s32.f32 %v500
        %v533 = vcvt.s32.f32 %v501
        %v534 = vcvt.s32.f32 %v502
        %v535 = vcvt.s32.f32 %v503
        %v536 = vcvt.s32.f32 %v504
        %v537 = vcvt.s32.f32 %v505
        %v538 = vcvt.s32.f32 %v506
        %v539 = vcvt.s32.f32 %v507
        %v540 = vcvt.s32.f32 %v508
        %v541 = vcvt.s32.f32 %v509
        %v542 = vcvt.s32.f32 %v510
        %v543 = vcvt.s32.f32 %v511
        %v544 = vcvt.s32.f32 %v512
        %v545 = vcvt.s32.f32 %v513
        %v546 = vcvt.s32.f32 %v514
        %v547 = vcvt.s32.f32 %v515
        %v548 = vcvt.s32.f32 %v516
        %v549 = vcvt.s32.f32 %v517
        %v550 = vcvt.s32.f32 %v518
        %v551 = vcvt.s32.f32 %v519
        %v552 = vcvt.s32.f32 %v520
        %v553 = vcvt.s32.f32 %v521
        %v554 = vcvt.s32.f32 %v522
        %v555 = vcvt.s32.f32 %v523
        %v556 = vcvt.s32.f32 %v524
        %v557 = vcvt.s32.f32 %v525
        %v558 = vcvt.s32.f32 %v526
        %v559 = vcvt.s32.f32 %v527
        %v560 = vcvt.s32.f32 %v528
        %v561 = vld [vmem:[#allocation6] sm:$0xff]
        %v562 = vld [vmem:[#allocation6 + $0x8] sm:$0xff]
        %v563 = vld [vmem:[#allocation6 + $0x10] sm:$0xff]
        %v564 = vld [vmem:[#allocation6 + $0x18] sm:$0xff]
        %v565 = vld [vmem:[#allocation6 + $0x20] sm:$0xff]
        %v566 = vld [vmem:[#allocation6 + $0x28] sm:$0xff]
        %v567 = vld [vmem:[#allocation6 + $0x30] sm:$0xff]
        %v568 = vld [vmem:[#allocation6 + $0x38] sm:$0xff]
        %vm569 = vcmask 523264
        %v571 = vsel %vm569, %v561, 0
        %v574 = vsel %vm569, %v562, 0
        %v577 = vsel %vm569, %v563, 0
        %v580 = vsel %vm569, %v564, 0
        %v583 = vsel %vm569, %v565, 0
        %v586 = vsel %vm569, %v566, 0
        %v589 = vsel %vm569, %v567, 0
        %v592 = vsel %vm569, %v568, 0
        %594 = vmatprep.subr.mxu0 %v530
        %595 = vmatpush1.msra.mxu0 %v529
        %596 = vmatprep.subr.mxu0 %v534
        %597 = vmatpush1.msra.mxu0 %v533
        %598 = vmatprep.subr.mxu0 %v538
        %599 = vmatpush1.msra.mxu0 %v537
        %600 = vmatprep.subr.mxu0 %v542
        %601 = vmatpush1.msra.mxu0 %v541
        %602 = vmatprep.subr.mxu0 %v546
        %603 = vmatpush1.msra.mxu0 %v545
        %604 = vmatprep.subr.mxu0 %v550
        %605 = vmatpush1.msra.mxu0 %v549
        %606 = vmatprep.subr.mxu0 %v554
        %607 = vmatpush1.msra.mxu0 %v553
        %608 = vmatprep.subr.mxu0 %v558
        %609 = vmatpush1.msra.mxu0 %v557
        %610 = vmatprep.subr.mxu0 0.0
        %611 = vmatpush1.msra.mxu0 0.0
        %612 = vmatprep.subr.mxu0 0.0
        %613 = vmatpush1.msra.mxu0 0.0
        %614 = vmatprep.subr.mxu0 0.0
        %615 = vmatpush1.msra.mxu0 0.0
        %616 = vmatprep.subr.mxu0 0.0
        %617 = vmatpush1.msra.mxu0 0.0
        %618 = vmatprep.subr.mxu0 0.0
        %619 = vmatpush1.msra.mxu0 0.0
        %620 = vmatprep.subr.mxu0 0.0
        %621 = vmatpush1.msra.mxu0 0.0
        %622 = vmatprep.subr.mxu0 0.0
        %623 = vmatpush1.msra.mxu0 0.0
        %624 = vmatprep.subr.mxu0 0.0
        %625 = vmatpush1.msra.mxu0 0.0
        %626 = vmatprep.subr.mxu0 0.0
        %627 = vmatpush1.msra.mxu0 0.0
        %628 = vmatprep.subr.mxu0 0.0
        %629 = vmatpush1.msra.mxu0 0.0
        %630 = vmatprep.subr.mxu0 0.0
        %631 = vmatpush1.msra.mxu0 0.0
        %632 = vmatprep.subr.mxu0 0.0
        %633 = vmatpush1.msra.mxu0 0.0
        %634 = vmatprep.subr.mxu0 0.0
        %635 = vmatpush1.msra.mxu0 0.0
        %636 = vmatprep.subr.mxu0 0.0
        %637 = vmatpush1.msra.mxu0 0.0
        %638 = vmatprep.subr.mxu0 0.0
        %639 = vmatpush1.msra.mxu0 0.0
        %640 = vmatprep.subr.mxu0 0.0
        %641 = vmatpush1.msra.mxu0 0.0
        %642 = vmatprep.subr.mxu0 0.0
        %643 = vmatpush1.msra.mxu0 0.0
        %644 = vmatprep.subr.mxu0 0.0
        %645 = vmatpush1.msra.mxu0 0.0
        %646 = vmatprep.subr.mxu0 0.0
        %647 = vmatpush1.msra.mxu0 0.0
        %648 = vmatprep.subr.mxu0 0.0
        %649 = vmatpush1.msra.mxu0 0.0
        %650 = vmatprep.subr.mxu0 0.0
        %651 = vmatpush1.msra.mxu0 0.0
        %652 = vmatprep.subr.mxu0 0.0
        %653 = vmatpush1.msra.mxu0 0.0
        %654 = vmatprep.subr.mxu0 0.0
        %655 = vmatpush1.msra.mxu0 0.0
        %656 = vmatprep.subr.mxu0 0.0
        %657 = vmatpush1.msra.mxu0 0.0
        %658 = vmatprep.mubr.f32.mxu0 0.0
        %659 = vmatmul.mubr.f32.gmra.mrb[0].mxu0 %v571
        %v660 = vpop.f32.mrb[0].mxu0
        %v661 = vadd.f32 0.0, %v660
        %v662 = vpop.f32.mrb[0].mxu0
        %v663 = vadd.f32 0.0, %v662
        %664 = vmatprep.mubr.f32.mxu0 0.0
        %665 = vmatmul.mubr.f32.gmra.mrb[0].mxu0 %v574
        %v666 = vpop.f32.mrb[0].mxu0
        %v667 = vadd.f32 0.0, %v666
        %v668 = vpop.f32.mrb[0].mxu0
        %v669 = vadd.f32 0.0, %v668
        %670 = vmatprep.mubr.f32.mxu0 0.0
        %671 = vmatmul.mubr.f32.gmra.mrb[0].mxu0 %v577
        %v672 = vpop.f32.mrb[0].mxu0
        %v673 = vadd.f32 0.0, %v672
        %v674 = vpop.f32.mrb[0].mxu0
        %v675 = vadd.f32 0.0, %v674
        %676 = vmatprep.mubr.f32.mxu0 0.0
        %677 = vmatmul.mubr.f32.gmra.mrb[0].mxu0 %v580
        %v678 = vpop.f32.mrb[0].mxu0
        %v679 = vadd.f32 0.0, %v678
        %v680 = vpop.f32.mrb[0].mxu0
        %v681 = vadd.f32 0.0, %v680
        %682 = vmatprep.mubr.f32.mxu0 0.0
        %683 = vmatmul.mubr.f32.gmra.mrb[0].mxu0 %v583
        %v684 = vpop.f32.mrb[0].mxu0
        %v685 = vadd.f32 0.0, %v684
        %v686 = vpop.f32.mrb[0].mxu0
        %v687 = vadd.f32 0.0, %v686
        %688 = vmatprep.mubr.f32.mxu0 0.0
        %689 = vmatmul.mubr.f32.gmra.mrb[0].mxu0 %v586
        %v690 = vpop.f32.mrb[0].mxu0
        %v691 = vadd.f32 0.0, %v690
        %v692 = vpop.f32.mrb[0].mxu0
        %v693 = vadd.f32 0.0, %v692
        %694 = vmatprep.mubr.f32.mxu0 0.0
        %695 = vmatmul.mubr.f32.gmra.mrb[0].mxu0 %v589
        %v696 = vpop.f32.mrb[0].mxu0
        %v697 = vadd.f32 0.0, %v696
        %v698 = vpop.f32.mrb[0].mxu0
        %v699 = vadd.f32 0.0, %v698
        %700 = vmatprep.mubr.f32.mxu0 0.0
        %701 = vmatmul.mubr.f32.gmra.mrb[0].mxu0 %v592
        %v702 = vpop.f32.mrb[0].mxu0
        %v703 = vadd.f32 0.0, %v702
        %v704 = vpop.f32.mrb[0].mxu0
        %v705 = vadd.f32 0.0, %v704
        %706 = vdwg.mxu0
        %707 = vmatprep.subr.mxu0 %v532
        %708 = vmatpush1.msra.mxu0 %v531
        %709 = vmatprep.subr.mxu0 %v536
        %710 = vmatpush1.msra.mxu0 %v535
        %711 = vmatprep.subr.mxu0 %v540
        %712 = vmatpush1.msra.mxu0 %v539
        %713 = vmatprep.subr.mxu0 %v544
        %714 = vmatpush1.msra.mxu0 %v543
        %715 = vmatprep.subr.mxu0 %v548
        %716 = vmatpush1.msra.mxu0 %v547
        %717 = vmatprep.subr.mxu0 %v552
        %718 = vmatpush1.msra.mxu0 %v551
        %719 = vmatprep.subr.mxu0 %v556
        %720 = vmatpush1.msra.mxu0 %v555
        %721 = vmatprep.subr.mxu0 %v560
        %722 = vmatpush1.msra.mxu0 %v559
        %723 = vmatprep.subr.mxu0 0.0
        %724 = vmatpush1.msra.mxu0 0.0
        %725 = vmatprep.subr.mxu0 0.0
        %726 = vmatpush1.msra.mxu0 0.0
        %727 = vmatprep.subr.mxu0 0.0
        %728 = vmatpush1.msra.mxu0 0.0
        %729 = vmatprep.subr.mxu0 0.0
        %730 = vmatpush1.msra.mxu0 0.0
        %731 = vmatprep.subr.mxu0 0.0
        %732 = vmatpush1.msra.mxu0 0.0
        %733 = vmatprep.subr.mxu0 0.0
        %734 = vmatpush1.msra.mxu0 0.0
        %735 = vmatprep.subr.mxu0 0.0
        %736 = vmatpush1.msra.mxu0 0.0
        %737 = vmatprep.subr.mxu0 0.0
        %738 = vmatpush1.msra.mxu0 0.0
        %739 = vmatprep.subr.mxu0 0.0
        %740 = vmatpush1.msra.mxu0 0.0
        %741 = vmatprep.subr.mxu0 0.0
        %742 = vmatpush1.msra.mxu0 0.0
        %743 = vmatprep.subr.mxu0 0.0
        %744 = vmatpush1.msra.mxu0 0.0
        %745 = vmatprep.subr.mxu0 0.0
        %746 = vmatpush1.msra.mxu0 0.0
        %747 = vmatprep.subr.mxu0 0.0
        %748 = vmatpush1.msra.mxu0 0.0
        %749 = vmatprep.subr.mxu0 0.0
        %750 = vmatpush1.msra.mxu0 0.0
        %751 = vmatprep.subr.mxu0 0.0
        %752 = vmatpush1.msra.mxu0 0.0
        %753 = vmatprep.subr.mxu0 0.0
        %754 = vmatpush1.msra.mxu0 0.0
        %755 = vmatprep.subr.mxu0 0.0
        %756 = vmatpush1.msra.mxu0 0.0
        %757 = vmatprep.subr.mxu0 0.0
        %758 = vmatpush1.msra.mxu0 0.0
        %759 = vmatprep.subr.mxu0 0.0
        %760 = vmatpush1.msra.mxu0 0.0
        %761 = vmatprep.subr.mxu0 0.0
        %762 = vmatpush1.msra.mxu0 0.0
        %763 = vmatprep.subr.mxu0 0.0
        %764 = vmatpush1.msra.mxu0 0.0
        %765 = vmatprep.subr.mxu0 0.0
        %766 = vmatpush1.msra.mxu0 0.0
        %767 = vmatprep.subr.mxu0 0.0
        %768 = vmatpush1.msra.mxu0 0.0
        %769 = vmatprep.subr.mxu0 0.0
        %770 = vmatpush1.msra.mxu0 0.0
        %771 = vmatprep.mubr.f32.mxu0 0.0
        %772 = vmatmul.mubr.f32.gmra.mrb[0].mxu0 %v571
        %v773 = vpop.f32.mrb[0].mxu0
        %v774 = vadd.f32 0.0, %v773
        %v775 = vpop.f32.mrb[0].mxu0
        %v776 = vadd.f32 0.0, %v775
        %777 = vmatprep.mubr.f32.mxu0 0.0
        %778 = vmatmul.mubr.f32.gmra.mrb[0].mxu0 %v574
        %v779 = vpop.f32.mrb[0].mxu0
        %v780 = vadd.f32 0.0, %v779
        %v781 = vpop.f32.mrb[0].mxu0
        %v782 = vadd.f32 0.0, %v781
        %783 = vmatprep.mubr.f32.mxu0 0.0
        %784 = vmatmul.mubr.f32.gmra.mrb[0].mxu0 %v577
        %v785 = vpop.f32.mrb[0].mxu0
        %v786 = vadd.f32 0.0, %v785
        %v787 = vpop.f32.mrb[0].mxu0
        %v788 = vadd.f32 0.0, %v787
        %789 = vmatprep.mubr.f32.mxu0 0.0
        %790 = vmatmul.mubr.f32.gmra.mrb[0].mxu0 %v580
        %v791 = vpop.f32.mrb[0].mxu0
        %v792 = vadd.f32 0.0, %v791
        %v793 = vpop.f32.mrb[0].mxu0
        %v794 = vadd.f32 0.0, %v793
        %795 = vmatprep.mubr.f32.mxu0 0.0
        %796 = vmatmul.mubr.f32.gmra.mrb[0].mxu0 %v583
        %v797 = vpop.f32.mrb[0].mxu0
        %v798 = vadd.f32 0.0, %v797
        %v799 = vpop.f32.mrb[0].mxu0
        %v800 = vadd.f32 0.0, %v799
        %801 = vmatprep.mubr.f32.mxu0 0.0
        %802 = vmatmul.mubr.f32.gmra.mrb[0].mxu0 %v586
        %v803 = vpop.f32.mrb[0].mxu0
        %v804 = vadd.f32 0.0, %v803
        %v805 = vpop.f32.mrb[0].mxu0
        %v806 = vadd.f32 0.0, %v805
        %807 = vmatprep.mubr.f32.mxu0 0.0
        %808 = vmatmul.mubr.f32.gmra.mrb[0].mxu0 %v589
        %v809 = vpop.f32.mrb[0].mxu0
        %v810 = vadd.f32 0.0, %v809
        %v811 = vpop.f32.mrb[0].mxu0
        %v812 = vadd.f32 0.0, %v811
        %813 = vmatprep.mubr.f32.mxu0 0.0
        %814 = vmatmul.mubr.f32.gmra.mrb[0].mxu0 %v592
        %v815 = vpop.f32.mrb[0].mxu0
        %v816 = vadd.f32 0.0, %v815
        %v817 = vpop.f32.mrb[0].mxu0
        %v818 = vadd.f32 0.0, %v817
        %819 = vdwg.mxu0
        %v821 = vsel %vm569, %v425, 0
        %v824 = vsel %vm569, %v426, 0
        %v827 = vsel %vm569, %v427, 0
        %v830 = vsel %vm569, %v428, 0
        %v833 = vsel %vm569, %v429, 0
        %v836 = vsel %vm569, %v430, 0
        %v839 = vsel %vm569, %v431, 0
        %v842 = vsel %vm569, %v432, 0
        %844 = vmatprep.subr.mxu0 %v394
        %845 = vmatpush1.msra.mxu0 %v393
        %846 = vmatprep.subr.mxu0 %v398
        %847 = vmatpush1.msra.mxu0 %v397
        %848 = vmatprep.subr.mxu0 %v402
        %849 = vmatpush1.msra.mxu0 %v401
        %850 = vmatprep.subr.mxu0 %v406
        %851 = vmatpush1.msra.mxu0 %v405
        %852 = vmatprep.subr.mxu0 %v410
        %853 = vmatpush1.msra.mxu0 %v409
        %854 = vmatprep.subr.mxu0 %v414
        %855 = vmatpush1.msra.mxu0 %v413
        %856 = vmatprep.subr.mxu0 %v418
        %857 = vmatpush1.msra.mxu0 %v417
        %858 = vmatprep.subr.mxu0 %v422
        %859 = vmatpush1.msra.mxu0 %v421
        %860 = vmatprep.subr.mxu0 0.0
        %861 = vmatpush1.msra.mxu0 0.0
        %862 = vmatprep.subr.mxu0 0.0
        %863 = vmatpush1.msra.mxu0 0.0
        %864 = vmatprep.subr.mxu0 0.0
        %865 = vmatpush1.msra.mxu0 0.0
        %866 = vmatprep.subr.mxu0 0.0
        %867 = vmatpush1.msra.mxu0 0.0
        %868 = vmatprep.subr.mxu0 0.0
        %869 = vmatpush1.msra.mxu0 0.0
        %870 = vmatprep.subr.mxu0 0.0
        %871 = vmatpush1.msra.mxu0 0.0
        %872 = vmatprep.subr.mxu0 0.0
        %873 = vmatpush1.msra.mxu0 0.0
        %874 = vmatprep.subr.mxu0 0.0
        %875 = vmatpush1.msra.mxu0 0.0
        %876 = vmatprep.subr.mxu0 0.0
        %877 = vmatpush1.msra.mxu0 0.0
        %878 = vmatprep.subr.mxu0 0.0
        %879 = vmatpush1.msra.mxu0 0.0
        %880 = vmatprep.subr.mxu0 0.0
        %881 = vmatpush1.msra.mxu0 0.0
        %882 = vmatprep.subr.mxu0 0.0
        %883 = vmatpush1.msra.mxu0 0.0
        %884 = vmatprep.subr.mxu0 0.0
        %885 = vmatpush1.msra.mxu0 0.0
        %886 = vmatprep.subr.mxu0 0.0
        %887 = vmatpush1.msra.mxu0 0.0
        %888 = vmatprep.subr.mxu0 0.0
        %889 = vmatpush1.msra.mxu0 0.0
        %890 = vmatprep.subr.mxu0 0.0
        %891 = vmatpush1.msra.mxu0 0.0
        %892 = vmatprep.subr.mxu0 0.0
        %893 = vmatpush1.msra.mxu0 0.0
        %894 = vmatprep.subr.mxu0 0.0
        %895 = vmatpush1.msra.mxu0 0.0
        %896 = vmatprep.subr.mxu0 0.0
        %897 = vmatpush1.msra.mxu0 0.0
        %898 = vmatprep.subr.mxu0 0.0
        %899 = vmatpush1.msra.mxu0 0.0
        %900 = vmatprep.subr.mxu0 0.0
        %901 = vmatpush1.msra.mxu0 0.0
        %902 = vmatprep.subr.mxu0 0.0
        %903 = vmatpush1.msra.mxu0 0.0
        %904 = vmatprep.subr.mxu0 0.0
        %905 = vmatpush1.msra.mxu0 0.0
        %906 = vmatprep.subr.mxu0 0.0
        %907 = vmatpush1.msra.mxu0 0.0
        %908 = vmatprep.mubr.f32.mxu0 0.0
        %909 = vmatmul.mubr.f32.gmra.mrb[0].mxu0 %v821
        %v910 = vpop.f32.mrb[0].mxu0
        %v911 = vadd.f32 %v661, %v910
        %v912 = vpop.f32.mrb[0].mxu0
        %v913 = vadd.f32 %v663, %v912
        %914 = vmatprep.mubr.f32.mxu0 0.0
        %915 = vmatmul.mubr.f32.gmra.mrb[0].mxu0 %v824
        %v916 = vpop.f32.mrb[0].mxu0
        %v917 = vadd.f32 %v667, %v916
        %v918 = vpop.f32.mrb[0].mxu0
        %v919 = vadd.f32 %v669, %v918
        %920 = vmatprep.mubr.f32.mxu0 0.0
        %921 = vmatmul.mubr.f32.gmra.mrb[0].mxu0 %v827
        %v922 = vpop.f32.mrb[0].mxu0
        %v923 = vadd.f32 %v673, %v922
        %v924 = vpop.f32.mrb[0].mxu0
        %v925 = vadd.f32 %v675, %v924
        %926 = vmatprep.mubr.f32.mxu0 0.0
        %927 = vmatmul.mubr.f32.gmra.mrb[0].mxu0 %v830
        %v928 = vpop.f32.mrb[0].mxu0
        %v929 = vadd.f32 %v679, %v928
        %v930 = vpop.f32.mrb[0].mxu0
        %v931 = vadd.f32 %v681, %v930
        %932 = vmatprep.mubr.f32.mxu0 0.0
        %933 = vmatmul.mubr.f32.gmra.mrb[0].mxu0 %v833
        %v934 = vpop.f32.mrb[0].mxu0
        %v935 = vadd.f32 %v685, %v934
        %v936 = vpop.f32.mrb[0].mxu0
        %v937 = vadd.f32 %v687, %v936
        %938 = vmatprep.mubr.f32.mxu0 0.0
        %939 = vmatmul.mubr.f32.gmra.mrb[0].mxu0 %v836
        %v940 = vpop.f32.mrb[0].mxu0
        %v941 = vadd.f32 %v691, %v940
        %v942 = vpop.f32.mrb[0].mxu0
        %v943 = vadd.f32 %v693, %v942
        %944 = vmatprep.mubr.f32.mxu0 0.0
        %945 = vmatmul.mubr.f32.gmra.mrb[0].mxu0 %v839
        %v946 = vpop.f32.mrb[0].mxu0
        %v947 = vadd.f32 %v697, %v946
        %v948 = vpop.f32.mrb[0].mxu0
        %v949 = vadd.f32 %v699, %v948
        %950 = vmatprep.mubr.f32.mxu0 0.0
        %951 = vmatmul.mubr.f32.gmra.mrb[0].mxu0 %v842
        %v952 = vpop.f32.mrb[0].mxu0
        %v953 = vadd.f32 %v703, %v952
        %v954 = vpop.f32.mrb[0].mxu0
        %v955 = vadd.f32 %v705, %v954
        %956 = vdwg.mxu0
        %957 = vmatprep.subr.mxu0 %v396
        %958 = vmatpush1.msra.mxu0 %v395
        %959 = vmatprep.subr.mxu0 %v400
        %960 = vmatpush1.msra.mxu0 %v399
        %961 = vmatprep.subr.mxu0 %v404
        %962 = vmatpush1.msra.mxu0 %v403
        %963 = vmatprep.subr.mxu0 %v408
        %964 = vmatpush1.msra.mxu0 %v407
        %965 = vmatprep.subr.mxu0 %v412
        %966 = vmatpush1.msra.mxu0 %v411
        %967 = vmatprep.subr.mxu0 %v416
        %968 = vmatpush1.msra.mxu0 %v415
        %969 = vmatprep.subr.mxu0 %v420
        %970 = vmatpush1.msra.mxu0 %v419
        %971 = vmatprep.subr.mxu0 %v424
        %972 = vmatpush1.msra.mxu0 %v423
        %973 = vmatprep.subr.mxu0 0.0
        %974 = vmatpush1.msra.mxu0 0.0
        %975 = vmatprep.subr.mxu0 0.0
        %976 = vmatpush1.msra.mxu0 0.0
        %977 = vmatprep.subr.mxu0 0.0
        %978 = vmatpush1.msra.mxu0 0.0
        %979 = vmatprep.subr.mxu0 0.0
        %980 = vmatpush1.msra.mxu0 0.0
        %981 = vmatprep.subr.mxu0 0.0
        %982 = vmatpush1.msra.mxu0 0.0
        %983 = vmatprep.subr.mxu0 0.0
        %984 = vmatpush1.msra.mxu0 0.0
        %985 = vmatprep.subr.mxu0 0.0
        %986 = vmatpush1.msra.mxu0 0.0
        %987 = vmatprep.subr.mxu0 0.0
        %988 = vmatpush1.msra.mxu0 0.0
        %989 = vmatprep.subr.mxu0 0.0
        %990 = vmatpush1.msra.mxu0 0.0
        %991 = vmatprep.subr.mxu0 0.0
        %992 = vmatpush1.msra.mxu0 0.0
        %993 = vmatprep.subr.mxu0 0.0
        %994 = vmatpush1.msra.mxu0 0.0
        %995 = vmatprep.subr.mxu0 0.0
        %996 = vmatpush1.msra.mxu0 0.0
        %997 = vmatprep.subr.mxu0 0.0
        %998 = vmatpush1.msra.mxu0 0.0
        %999 = vmatprep.subr.mxu0 0.0
        %1000 = vmatpush1.msra.mxu0 0.0
        %1001 = vmatprep.subr.mxu0 0.0
        %1002 = vmatpush1.msra.mxu0 0.0
        %1003 = vmatprep.subr.mxu0 0.0
        %1004 = vmatpush1.msra.mxu0 0.0
        %1005 = vmatprep.subr.mxu0 0.0
        %1006 = vmatpush1.msra.mxu0 0.0
        %1007 = vmatprep.subr.mxu0 0.0
        %1008 = vmatpush1.msra.mxu0 0.0
        %1009 = vmatprep.subr.mxu0 0.0
        %1010 = vmatpush1.msra.mxu0 0.0
        %1011 = vmatprep.subr.mxu0 0.0
        %1012 = vmatpush1.msra.mxu0 0.0
        %1013 = vmatprep.subr.mxu0 0.0
        %1014 = vmatpush1.msra.mxu0 0.0
        %1015 = vmatprep.subr.mxu0 0.0
        %1016 = vmatpush1.msra.mxu0 0.0
        %1017 = vmatprep.subr.mxu0 0.0
        %1018 = vmatpush1.msra.mxu0 0.0
        %1019 = vmatprep.subr.mxu0 0.0
        %1020 = vmatpush1.msra.mxu0 0.0
        %1021 = vmatprep.mubr.f32.mxu0 0.0
        %1022 = vmatmul.mubr.f32.gmra.mrb[0].mxu0 %v821
        %v1023 = vpop.f32.mrb[0].mxu0
        %v1024 = vadd.f32 %v774, %v1023
        %v1025 = vpop.f32.mrb[0].mxu0
        %v1026 = vadd.f32 %v776, %v1025
        %1027 = vmatprep.mubr.f32.mxu0 0.0
        %1028 = vmatmul.mubr.f32.gmra.mrb[0].mxu0 %v824
        %v1029 = vpop.f32.mrb[0].mxu0
        %v1030 = vadd.f32 %v780, %v1029
        %v1031 = vpop.f32.mrb[0].mxu0
        %v1032 = vadd.f32 %v782, %v1031
        %1033 = vmatprep.mubr.f32.mxu0 0.0
        %1034 = vmatmul.mubr.f32.gmra.mrb[0].mxu0 %v827
        %v1035 = vpop.f32.mrb[0].mxu0
        %v1036 = vadd.f32 %v786, %v1035
        %v1037 = vpop.f32.mrb[0].mxu0
        %v1038 = vadd.f32 %v788, %v1037
        %1039 = vmatprep.mubr.f32.mxu0 0.0
        %1040 = vmatmul.mubr.f32.gmra.mrb[0].mxu0 %v830
        %v1041 = vpop.f32.mrb[0].mxu0
        %v1042 = vadd.f32 %v792, %v1041
        %v1043 = vpop.f32.mrb[0].mxu0
        %v1044 = vadd.f32 %v794, %v1043
        %1045 = vmatprep.mubr.f32.mxu0 0.0
        %1046 = vmatmul.mubr.f32.gmra.mrb[0].mxu0 %v833
        %v1047 = vpop.f32.mrb[0].mxu0
        %v1048 = vadd.f32 %v798, %v1047
        %v1049 = vpop.f32.mrb[0].mxu0
        %v1050 = vadd.f32 %v800, %v1049
        %1051 = vmatprep.mubr.f32.mxu0 0.0
        %1052 = vmatmul.mubr.f32.gmra.mrb[0].mxu0 %v836
        %v1053 = vpop.f32.mrb[0].mxu0
        %v1054 = vadd.f32 %v804, %v1053
        %v1055 = vpop.f32.mrb[0].mxu0
        %v1056 = vadd.f32 %v806, %v1055
        %1057 = vmatprep.mubr.f32.mxu0 0.0
        %1058 = vmatmul.mubr.f32.gmra.mrb[0].mxu0 %v839
        %v1059 = vpop.f32.mrb[0].mxu0
        %v1060 = vadd.f32 %v810, %v1059
        %v1061 = vpop.f32.mrb[0].mxu0
        %v1062 = vadd.f32 %v812, %v1061
        %1063 = vmatprep.mubr.f32.mxu0 0.0
        %1064 = vmatmul.mubr.f32.gmra.mrb[0].mxu0 %v842
        %v1065 = vpop.f32.mrb[0].mxu0
        %v1066 = vadd.f32 %v816, %v1065
        %v1067 = vpop.f32.mrb[0].mxu0
        %v1068 = vadd.f32 %v818, %v1067
        %1069 = vdwg.mxu0
        %v1070 = vld [vmem:[%s3] sm:$0xff]
        %v1071 = vld [vmem:[%s3 + $0x8] sm:$0xff]
        %v1072 = vld [vmem:[%s3 + $0x10] sm:$0xff]
        %v1073 = vld [vmem:[%s3 + $0x18] sm:$0xff]
        %v1074 = vld [vmem:[%s3 + $0x20] sm:$0xff]
        %v1075 = vld [vmem:[%s3 + $0x28] sm:$0xff]
        %v1076 = vld [vmem:[%s3 + $0x30] sm:$0xff]
        %v1077 = vld [vmem:[%s3 + $0x38] sm:$0xff]
        %1079 = vset.pattern.permute.xlu0 0
        %1080 = vperm.xlu0 %1079, %v1070
        %v1081 = vpop.permute.xlu0 %1080
        %1084 = vset.pattern.permute.xlu0 0
        %1085 = vperm.xlu0 %1084, %v1071
        %v1086 = vpop.permute.xlu0 %1085
        %1089 = vset.pattern.permute.xlu0 0
        %1090 = vperm.xlu0 %1089, %v1072
        %v1091 = vpop.permute.xlu0 %1090
        %1094 = vset.pattern.permute.xlu0 0
        %1095 = vperm.xlu0 %1094, %v1073
        %v1096 = vpop.permute.xlu0 %1095
        %1099 = vset.pattern.permute.xlu0 0
        %1100 = vperm.xlu0 %1099, %v1074
        %v1101 = vpop.permute.xlu0 %1100
        %1104 = vset.pattern.permute.xlu0 0
        %1105 = vperm.xlu0 %1104, %v1075
        %v1106 = vpop.permute.xlu0 %1105
        %1109 = vset.pattern.permute.xlu0 0
        %1110 = vperm.xlu0 %1109, %v1076
        %v1111 = vpop.permute.xlu0 %1110
        %1114 = vset.pattern.permute.xlu0 0
        %1115 = vperm.xlu0 %1114, %v1077
        %v1116 = vpop.permute.xlu0 %1115
        %v1118 = vadd.f32 %v911, %v1081
        %v1119 = vadd.f32 %v913, %v1081
        %v1120 = vadd.f32 %v1024, %v1081
        %v1121 = vadd.f32 %v1026, %v1081
        %v1122 = vadd.f32 %v917, %v1086
        %v1123 = vadd.f32 %v919, %v1086
        %v1124 = vadd.f32 %v1030, %v1086
        %v1125 = vadd.f32 %v1032, %v1086
        %v1126 = vadd.f32 %v923, %v1091
        %v1127 = vadd.f32 %v925, %v1091
        %v1128 = vadd.f32 %v1036, %v1091
        %v1129 = vadd.f32 %v1038, %v1091
        %v1130 = vadd.f32 %v929, %v1096
        %v1131 = vadd.f32 %v931, %v1096
        %v1132 = vadd.f32 %v1042, %v1096
        %v1133 = vadd.f32 %v1044, %v1096
        %v1134 = vadd.f32 %v935, %v1101
        %v1135 = vadd.f32 %v937, %v1101
        %v1136 = vadd.f32 %v1048, %v1101
        %v1137 = vadd.f32 %v1050, %v1101
        %v1138 = vadd.f32 %v941, %v1106
        %v1139 = vadd.f32 %v943, %v1106
        %v1140 = vadd.f32 %v1054, %v1106
        %v1141 = vadd.f32 %v1056, %v1106
        %v1142 = vadd.f32 %v947, %v1111
        %v1143 = vadd.f32 %v949, %v1111
        %v1144 = vadd.f32 %v1060, %v1111
        %v1145 = vadd.f32 %v1062, %v1111
        %v1146 = vadd.f32 %v953, %v1116
        %v1147 = vadd.f32 %v955, %v1116
        %v1148 = vadd.f32 %v1066, %v1116
        %v1149 = vadd.f32 %v1068, %v1116
        %v1150 = vmax.f32 %v1118, 0.0
        %v1151 = vmax.f32 %v1119, 0.0
        %v1152 = vmax.f32 %v1120, 0.0
        %v1153 = vmax.f32 %v1121, 0.0
        %v1154 = vmax.f32 %v1122, 0.0
        %v1155 = vmax.f32 %v1123, 0.0
        %v1156 = vmax.f32 %v1124, 0.0
        %v1157 = vmax.f32 %v1125, 0.0
        %v1158 = vmax.f32 %v1126, 0.0
        %v1159 = vmax.f32 %v1127, 0.0
        %v1160 = vmax.f32 %v1128, 0.0
        %v1161 = vmax.f32 %v1129, 0.0
        %v1162 = vmax.f32 %v1130, 0.0
        %v1163 = vmax.f32 %v1131, 0.0
        %v1164 = vmax.f32 %v1132, 0.0
        %v1165 = vmax.f32 %v1133, 0.0
        %v1166 = vmax.f32 %v1134, 0.0
        %v1167 = vmax.f32 %v1135, 0.0
        %v1168 = vmax.f32 %v1136, 0.0
        %v1169 = vmax.f32 %v1137, 0.0
        %v1170 = vmax.f32 %v1138, 0.0
        %v1171 = vmax.f32 %v1139, 0.0
        %v1172 = vmax.f32 %v1140, 0.0
        %v1173 = vmax.f32 %v1141, 0.0
        %v1174 = vmax.f32 %v1142, 0.0
        %v1175 = vmax.f32 %v1143, 0.0
        %v1176 = vmax.f32 %v1144, 0.0
        %v1177 = vmax.f32 %v1145, 0.0
        %v1178 = vmax.f32 %v1146, 0.0
        %v1179 = vmax.f32 %v1147, 0.0
        %v1180 = vmax.f32 %v1148, 0.0
        %v1181 = vmax.f32 %v1149, 0.0
        %v1182 = vld [vmem:[%s4] sm:$0x1]
        %v1183 = vld [vmem:[#allocation2] sm:$0x1]
        %1185 = vset.pattern.permute.xlu0 0
        %1186 = vperm.xlu0 %1185, %v1183
        %v1187 = vpop.permute.xlu0 %1186
        %v1189 = vlaneseq
        %v1190 = vshrl.u32 %v1189, 7
        %v1191 = vsub.s32 0, %v1190
        %v1192 = vrot.slane %v1187, %v1191
        %v1194 = vsel %vm569, %v1182, 0
        %1196 = vmatprep.subr.mxu0 %v1151
        %1197 = vmatpush1.msra.mxu0 %v1150
        %1198 = vmatprep.subr.mxu0 %v1155
        %1199 = vmatpush1.msra.mxu0 %v1154
        %1200 = vmatprep.subr.mxu0 %v1159
        %1201 = vmatpush1.msra.mxu0 %v1158
        %1202 = vmatprep.subr.mxu0 %v1163
        %1203 = vmatpush1.msra.mxu0 %v1162
        %1204 = vmatprep.subr.mxu0 %v1167
        %1205 = vmatpush1.msra.mxu0 %v1166
        %1206 = vmatprep.subr.mxu0 %v1171
        %1207 = vmatpush1.msra.mxu0 %v1170
        %1208 = vmatprep.subr.mxu0 %v1175
        %1209 = vmatpush1.msra.mxu0 %v1174
        %1210 = vmatprep.subr.mxu0 %v1179
        %1211 = vmatpush1.msra.mxu0 %v1178
        %1212 = vmatprep.subr.mxu0 0.0
        %1213 = vmatpush1.msra.mxu0 0.0
        %1214 = vmatprep.subr.mxu0 0.0
        %1215 = vmatpush1.msra.mxu0 0.0
        %1216 = vmatprep.subr.mxu0 0.0
        %1217 = vmatpush1.msra.mxu0 0.0
        %1218 = vmatprep.subr.mxu0 0.0
        %1219 = vmatpush1.msra.mxu0 0.0
        %1220 = vmatprep.subr.mxu0 0.0
        %1221 = vmatpush1.msra.mxu0 0.0
        %1222 = vmatprep.subr.mxu0 0.0
        %1223 = vmatpush1.msra.mxu0 0.0
        %1224 = vmatprep.subr.mxu0 0.0
        %1225 = vmatpush1.msra.mxu0 0.0
        %1226 = vmatprep.subr.mxu0 0.0
        %1227 = vmatpush1.msra.mxu0 0.0
        %1228 = vmatprep.subr.mxu0 0.0
        %1229 = vmatpush1.msra.mxu0 0.0
        %1230 = vmatprep.subr.mxu0 0.0
        %1231 = vmatpush1.msra.mxu0 0.0
        %1232 = vmatprep.subr.mxu0 0.0
        %1233 = vmatpush1.msra.mxu0 0.0
        %1234 = vmatprep.subr.mxu0 0.0
        %1235 = vmatpush1.msra.mxu0 0.0
        %1236 = vmatprep.subr.mxu0 0.0
        %1237 = vmatpush1.msra.mxu0 0.0
        %1238 = vmatprep.subr.mxu0 0.0
        %1239 = vmatpush1.msra.mxu0 0.0
        %1240 = vmatprep.subr.mxu0 0.0
        %1241 = vmatpush1.msra.mxu0 0.0
        %1242 = vmatprep.subr.mxu0 0.0
        %1243 = vmatpush1.msra.mxu0 0.0
        %1244 = vmatprep.subr.mxu0 0.0
        %1245 = vmatpush1.msra.mxu0 0.0
        %1246 = vmatprep.subr.mxu0 0.0
        %1247 = vmatpush1.msra.mxu0 0.0
        %1248 = vmatprep.subr.mxu0 0.0
        %1249 = vmatpush1.msra.mxu0 0.0
        %1250 = vmatprep.subr.mxu0 0.0
        %1251 = vmatpush1.msra.mxu0 0.0
        %1252 = vmatprep.subr.mxu0 0.0
        %1253 = vmatpush1.msra.mxu0 0.0
        %1254 = vmatprep.subr.mxu0 0.0
        %1255 = vmatpush1.msra.mxu0 0.0
        %1256 = vmatprep.subr.mxu0 0.0
        %1257 = vmatpush1.msra.mxu0 0.0
        %1258 = vmatprep.subr.mxu0 0.0
        %1259 = vmatpush1.msra.mxu0 0.0
        %1260 = vmatprep.mubr.f32.mxu0 0.0
        %1261 = vmatmul.mubr.f32.gmra.mrb[0].mxu0 %v1194
        %v1262 = vpop.f32.mrb[0].mxu0
        %v1263 = vadd.f32 %v1192, %v1262
        %v1264 = vpop.f32.mrb[0].mxu0
        %v1265 = vadd.f32 %v1192, %v1264
        %1266 = vdwg.mxu0
        %1267 = vmatprep.subr.mxu0 %v1153
        %1268 = vmatpush1.msra.mxu0 %v1152
        %1269 = vmatprep.subr.mxu0 %v1157
        %1270 = vmatpush1.msra.mxu0 %v1156
        %1271 = vmatprep.subr.mxu0 %v1161
        %1272 = vmatpush1.msra.mxu0 %v1160
        %1273 = vmatprep.subr.mxu0 %v1165
        %1274 = vmatpush1.msra.mxu0 %v1164
        %1275 = vmatprep.subr.mxu0 %v1169
        %1276 = vmatpush1.msra.mxu0 %v1168
        %1277 = vmatprep.subr.mxu0 %v1173
        %1278 = vmatpush1.msra.mxu0 %v1172
        %1279 = vmatprep.subr.mxu0 %v1177
        %1280 = vmatpush1.msra.mxu0 %v1176
        %1281 = vmatprep.subr.mxu0 %v1181
        %1282 = vmatpush1.msra.mxu0 %v1180
        %1283 = vmatprep.subr.mxu0 0.0
        %1284 = vmatpush1.msra.mxu0 0.0
        %1285 = vmatprep.subr.mxu0 0.0
        %1286 = vmatpush1.msra.mxu0 0.0
        %1287 = vmatprep.subr.mxu0 0.0
        %1288 = vmatpush1.msra.mxu0 0.0
        %1289 = vmatprep.subr.mxu0 0.0
        %1290 = vmatpush1.msra.mxu0 0.0
        %1291 = vmatprep.subr.mxu0 0.0
        %1292 = vmatpush1.msra.mxu0 0.0
        %1293 = vmatprep.subr.mxu0 0.0
        %1294 = vmatpush1.msra.mxu0 0.0
        %1295 = vmatprep.subr.mxu0 0.0
        %1296 = vmatpush1.msra.mxu0 0.0
        %1297 = vmatprep.subr.mxu0 0.0
        %1298 = vmatpush1.msra.mxu0 0.0
        %1299 = vmatprep.subr.mxu0 0.0
        %1300 = vmatpush1.msra.mxu0 0.0
        %1301 = vmatprep.subr.mxu0 0.0
        %1302 = vmatpush1.msra.mxu0 0.0
        %1303 = vmatprep.subr.mxu0 0.0
        %1304 = vmatpush1.msra.mxu0 0.0
        %1305 = vmatprep.subr.mxu0 0.0
        %1306 = vmatpush1.msra.mxu0 0.0
        %1307 = vmatprep.subr.mxu0 0.0
        %1308 = vmatpush1.msra.mxu0 0.0
        %1309 = vmatprep.subr.mxu0 0.0
        %1310 = vmatpush1.msra.mxu0 0.0
        %1311 = vmatprep.subr.mxu0 0.0
        %1312 = vmatpush1.msra.mxu0 0.0
        %1313 = vmatprep.subr.mxu0 0.0
        %1314 = vmatpush1.msra.mxu0 0.0
        %1315 = vmatprep.subr.mxu0 0.0
        %1316 = vmatpush1.msra.mxu0 0.0
        %1317 = vmatprep.subr.mxu0 0.0
        %1318 = vmatpush1.msra.mxu0 0.0
        %1319 = vmatprep.subr.mxu0 0.0
        %1320 = vmatpush1.msra.mxu0 0.0
        %1321 = vmatprep.subr.mxu0 0.0
        %1322 = vmatpush1.msra.mxu0 0.0
        %1323 = vmatprep.subr.mxu0 0.0
        %1324 = vmatpush1.msra.mxu0 0.0
        %1325 = vmatprep.subr.mxu0 0.0
        %1326 = vmatpush1.msra.mxu0 0.0
        %1327 = vmatprep.subr.mxu0 0.0
        %1328 = vmatpush1.msra.mxu0 0.0
        %1329 = vmatprep.subr.mxu0 0.0
        %1330 = vmatpush1.msra.mxu0 0.0
        %1331 = vmatprep.mubr.f32.mxu0 0.0
        %1332 = vmatmul.mubr.f32.gmra.mrb[0].mxu0 %v1194
        %v1333 = vpop.f32.mrb[0].mxu0
        %v1334 = vadd.f32 %v1192, %v1333
        %v1335 = vpop.f32.mrb[0].mxu0
        %v1336 = vadd.f32 %v1192, %v1335
        %1337 = vdwg.mxu0
        %v1342 = vcombine.low %v1263, %v1265
        %v1343 = vcombine.low %v1334, %v1336
        %v1345 = vunpack.c.l.s4 1966171168
        %v1346 = vunpack.c.0.s8 %v1345
        %v1347 = vlaneseq
        %v1348 = vshrl.u32 %v1347, 7
        %v1349 = vsub.s32 %v1346, %v1348
        %v1350 = vrot.slane %v1342, %v1349
        %v1352 = vunpack.c.l.s4 1966171168
        %v1353 = vunpack.c.0.s8 %v1352
        %v1354 = vlaneseq
        %v1355 = vshrl.u32 %v1354, 7
        %v1356 = vsub.s32 %v1353, %v1355
        %v1357 = vrot.slane %v1343, %v1356
        %v1358 = vcombine.low %v1350, %v1357
        %v1360 = vunpack.c.l.s4 1966171168
        %v1361 = vunpack.c.0.s8 %v1360
        %v1362 = vlaneseq
        %v1363 = vshrl.u32 %v1362, 7
        %v1364 = vsub.s32 %v1361, %v1363
        %v1365 = vrot.slane %v1358, %v1364
        %v1367 = vlaneseq
        %vm1368 = vcmp.ge.s32.totalorder %v1367, 0
        %vm1369 = vcmp.lt.s32.totalorder %v1367, 512
        %vm1370 = vmand %vm1368, %vm1369
        %1371 = vst.msk [vmem:[%s284] sm:$0xf] %vm1370, %v1365
        %s1372 = sand.u32 %s165, 1
        %s1373 = scalar_lea.sflag [#allocation5], %s1372
        %s1374 = sand.u32 %s165, 1
        %s1375 = smul.addr %s1374, 4
        %s1376 = scalar_lea.vmem [#allocation8], %s1375
        // Predicated region
        $region53: #{tpu_custom_call.1} parent=43 // pred_check
          %p1377 = pneg %p175
        $region54: #{tpu_custom_call.1} parent=43 // pred_check_branch
          %1379 = sbr.rel (%p1377) target = $region56
        $region55: #{tpu_custom_call.1} parent=43 // pred_region
          %s1380 = smul.u32 4, %s26
          %s1382 = ssub.s32 64, 64
          %1383 = vsyncadd %s1373, %s1382
          %s1384 = smul.addr %s1380, 16
          %s1385 = scalar_lea.hbm %s6, %s1384
          %s1387 = sshll.u32 %s1376, 4
          %s1388 = int_to_ptr.vmem [resolvable:$true] %s1387
          %1390 = dma.vmem_to_hbm [thread:$0]  %s1388, 64, %s1385, %s1373
        $region56: #{tpu_custom_call.1} parent=43 // pred_fallthru
          _
      $region44: #{tpu_custom_call.1} parent=5 // pred_fallthru
        _
      %p1391 = scmp.le.s32.totalorder 2, %s21
      // Predicated region
      $region57: #{tpu_custom_call.1} parent=5 // pred_check
        %p1392 = pneg %p1391
      $region58: #{tpu_custom_call.1} parent=5 // pred_check_branch
        %1394 = sbr.rel (%p1392) target = $region60
      $region59: #{tpu_custom_call.1} parent=5 // pred_region
        %s1395 = ssub.s32 %s21, 2
        // Predicated region
        $region61: #{tpu_custom_call.1} parent=59 // pred_check
          %p1396 = pneg %p181
        $region62: #{tpu_custom_call.1} parent=59 // pred_check_branch
          %1398 = sbr.rel (%p1396) target = $region64
        $region63: #{tpu_custom_call.1} parent=59 // pred_region
          %s1399 = sand.u32 %s166, 1
          %s1400 = scalar_lea.sflag [#allocation5], %s1399
          %s1401 = sand.u32 %s166, 1
          %s1402 = smul.addr %s1401, 4
          %s1403 = scalar_lea.vmem [#allocation8], %s1402
          %1404 = dma.done %s1400, 64
        $region64: #{tpu_custom_call.1} parent=59 // pred_fallthru
          _
      $region60: #{tpu_custom_call.1} parent=5 // pred_fallthru
        _
    $region6: #{tpu_custom_call.1} parent=1 // loop_footer
      %s25 = sadd.s32 1, %s21
    $region7: #{tpu_custom_call.1} parent=1 // loop_footer_branch
      %20 = sbr.rel target = $region3
    $region8: #{tpu_custom_call.1} parent=1 // loop_exit
      _
    %1405 = vsyncpa [#allocation4], 1
    %s1406 = scalar_lea.sflag [#allocation4], 1
    %1407 = vsyncpa %s1406, 1
    %1408 = vsyncpa [#allocation7], 1
    %1409 = vsyncpa [#allocation5], 1
    %s1410 = scalar_lea.sflag [#allocation5], 1
    %1411 = vsyncpa %s1410, 1

// kernel: tpu_custom_call.1
$region0: #{tpu_custom_call.1}
  #allocation0 [shape = 'u32[]', space=smem, size = 0x4, offset = 0x4, fixed_abs, tag = 'smem constant byte address 0x4 - core index']
  #allocation1 [shape = 'u32[144,128]{1,0:T(1,128)}', space=vmem, size = 0x12000, scoped, tag = 'internal scratch']
  #allocation2 [shape = 'f32[1,1]{1,0:T(1,128)S(1)}', space=vmem, size = 0x200, scoped, tag = 'scoped memory for tpu_custom_call.1']
  %s0 = inlined_call_operand.hbm [shape: s32[2,1024], index: 0, kind: input, shape index: {}]
  %s1 = inlined_call_operand.vmem [shape: f32[64,64], index: 1, kind: input, shape index: {}]
  %s2 = inlined_call_operand.hbm [shape: f32[64,64], index: 2, kind: input, shape index: {}]
  %s3 = inlined_call_operand.vmem [shape: f32[64,1], index: 3, kind: input, shape index: {}]
  %s4 = inlined_call_operand.vmem [shape: f32[1,64], index: 4, kind: input, shape index: {}]
  %s5 = inlined_call_operand.<no memory space> [shape: f32[1,1], index: 5, kind: input, shape index: {}]
  %s6 = inlined_call_operand.hbm [shape: f32[1,1024], index: 6, kind: output, shape index: {}]
  %s7 = sld [smem:[#allocation0]]
  $region65: #{tpu_custom_call.1} parent=0
    _
  %s9 = ssub.s32 1, %s7
  %s10 = scalar_select 0, %s9, %s7
  %v11 = vstv %s5
  %12 = vst [vmem:[#allocation2] sm:$0x1] %v11
  $region1: #{tpu_custom_call.1} parent=0
    #allocation3 [shape = 'u8[8192]{0}', space=vmem, size = 0x2000, scoped, tag = 'input window, operand 0']
    #allocation4 [shape = 's32[2]{0}', space=sflag, size = 0x8, scoped, tag = 'scoped memory for tpu_custom_call.1']
    #allocation5 [shape = 's32[2]{0}', space=sflag, size = 0x8, scoped, tag = 'scoped memory for tpu_custom_call.1']
    #allocation6 [shape = 'u8[32768]{0}', space=vmem, size = 0x8000, scoped, tag = 'input window, operand 2, single buffered']
    #allocation7 [shape = 's32[1]{0}', space=sflag, size = 0x4, scoped, tag = 'scoped memory for tpu_custom_call.1']
    #allocation8 [shape = 'u8[4096]{0}', space=vmem, size = 0x1000, scoped, tag = 'output window, operand 0']
    %13 = vsyncpa [#allocation4], 0
    %s14 = scalar_lea.sflag [#allocation4], 1
    %15 = vsyncpa %s14, 0
    %16 = vsyncpa [#allocation7], 0
    %17 = vsyncpa [#allocation5], 0
    %s18 = scalar_lea.sflag [#allocation5], 1
    %19 = vsyncpa %s18, 0
    loop: start=0, step=1, limit=4
    $region2: #{tpu_custom_call.1} parent=1 // loop_pre_header
      _
    $region3: #{tpu_custom_call.1} parent=1 // loop_header
      %s21 = sphi 0, %s25
      %p22 = scmp.ge.s32.totalorder %s21, 4
      %s31 = sphi 0, %s33
      %s34 = sphi 0, %s31
      %s35 = sphi 0, %s34
      %s51 = sphi 0, %s35
      %s55 = sphi 0, %s55
      %s57 = sphi 0, %s55
      %s58 = sphi 0, %s57
      %s72 = sphi 0, %s58
      %s76 = sphi 0, %s76
      %s78 = sphi 0, %s76
      %s79 = sphi 0, %s78
      %s93 = sphi 0, %s79
      %s97 = sphi 0, %s97
      %s99 = sphi 0, %s97
      %s100 = sphi 0, %s99
      %s114 = sphi 0, %s100
      %s118 = sphi 0, %s118
      %s120 = sphi 0, %s118
      %s121 = sphi 0, %s120
      %s135 = sphi 0, %s121
      %s139 = sphi 0, %s139
      %s141 = sphi 0, %s139
      %s142 = sphi 0, %s141
      %s156 = sphi 0, %s142
      %s162 = sphi 0, %s164
      %s165 = sphi 0, %s162
      %s166 = sphi 0, %s165
      %s182 = sphi 0, %s166
    $region4: #{tpu_custom_call.1} parent=1 // loop_header_branch
      %24 = sbr.rel (%p22) target = $region8
    $region5: #{tpu_custom_call.1} parent=1 // loop_body
      %s26 = ssub.s32 %s21, 1
      %s27 = ssub.s32 %s21, 2
      %s28 = sadd.s32 %s21, 1
      %s29 = ssub.s32 %s21, %s28
      %p30 = scmp.eq.s32.totalorder %s29, 0
      %s32 = sadd.s32 %s31, 1
      %s33 = scalar_select %p30, %s31, %s32
      %p36 = pneg %p30
      %p37 = scmp.eq.s32.totalorder %s21, 1
      %p38 = por %p36, %p37
      %p39 = scmp.ne.s32.totalorder %s31, %s34
      %p40 = scmp.eq.s32.totalorder %s21, 0
      %p41 = por %p39, %p40
      %p42 = scmp.ne.s32.totalorder %s31, %s34
      %p43 = scmp.eq.s32.totalorder %s26, 1
      %p44 = por %p42, %p43
      %p45 = scmp.ne.s32.totalorder %s34, %s35
      %p46 = scmp.eq.s32.totalorder %s26, 0
      %p47 = por %p45, %p46
      %p48 = scmp.ne.s32.totalorder %s34, %s35
      %p49 = scmp.eq.s32.totalorder %s27, 1
      %p50 = por %p48, %p49
      %p52 = scmp.ne.s32.totalorder %s35, %s51
      %p53 = scmp.eq.s32.totalorder %s27, 0
      %p54 = por %p52, %p53
      %s56 = sadd.s32 %s55, 1
      %p59 = scmp.eq.s32.totalorder %s21, 1
      %p60 = scmp.ne.s32.totalorder %s55, %s57
      %p61 = scmp.eq.s32.totalorder %s21, 0
      %p62 = por %p60, %p61
      %p63 = scmp.ne.s32.totalorder %s55, %s57
      %p64 = scmp.eq.s32.totalorder %s26, 1
      %p65 = por %p63, %p64
      %p66 = scmp.ne.s32.totalorder %s57, %s58
      %p67 = scmp.eq.s32.totalorder %s26, 0
      %p68 = por %p66, %p67
      %p69 = scmp.ne.s32.totalorder %s57, %s58
      %p70 = scmp.eq.s32.totalorder %s27, 1
      %p71 = por %p69, %p70
      %p73 = scmp.ne.s32.totalorder %s58, %s72
      %p74 = scmp.eq.s32.totalorder %s27, 0
      %p75 = por %p73, %p74
      %s77 = sadd.s32 %s76, 1
      %p80 = scmp.eq.s32.totalorder %s21, 1
      %p81 = scmp.ne.s32.totalorder %s76, %s78
      %p82 = scmp.eq.s32.totalorder %s21, 0
      %p83 = por %p81, %p82
      %p84 = scmp.ne.s32.totalorder %s76, %s78
      %p85 = scmp.eq.s32.totalorder %s26, 1
      %p86 = por %p84, %p85
      %p87 = scmp.ne.s32.totalorder %s78, %s79
      %p88 = scmp.eq.s32.totalorder %s26, 0
      %p89 = por %p87, %p88
      %p90 = scmp.ne.s32.totalorder %s78, %s79
      %p91 = scmp.eq.s32.totalorder %s27, 1
      %p92 = por %p90, %p91
      %p94 = scmp.ne.s32.totalorder %s79, %s93
      %p95 = scmp.eq.s32.totalorder %s27, 0
      %p96 = por %p94, %p95
      %s98 = sadd.s32 %s97, 1
      %p101 = scmp.eq.s32.totalorder %s21, 1
      %p102 = scmp.ne.s32.totalorder %s97, %s99
      %p103 = scmp.eq.s32.totalorder %s21, 0
      %p104 = por %p102, %p103
      %p105 = scmp.ne.s32.totalorder %s97, %s99
      %p106 = scmp.eq.s32.totalorder %s26, 1
      %p107 = por %p105, %p106
      %p108 = scmp.ne.s32.totalorder %s99, %s100
      %p109 = scmp.eq.s32.totalorder %s26, 0
      %p110 = por %p108, %p109
      %p111 = scmp.ne.s32.totalorder %s99, %s100
      %p112 = scmp.eq.s32.totalorder %s27, 1
      %p113 = por %p111, %p112
      %p115 = scmp.ne.s32.totalorder %s100, %s114
      %p116 = scmp.eq.s32.totalorder %s27, 0
      %p117 = por %p115, %p116
      %s119 = sadd.s32 %s118, 1
      %p122 = scmp.eq.s32.totalorder %s21, 1
      %p123 = scmp.ne.s32.totalorder %s118, %s120
      %p124 = scmp.eq.s32.totalorder %s21, 0
      %p125 = por %p123, %p124
      %p126 = scmp.ne.s32.totalorder %s118, %s120
      %p127 = scmp.eq.s32.totalorder %s26, 1
      %p128 = por %p126, %p127
      %p129 = scmp.ne.s32.totalorder %s120, %s121
      %p130 = scmp.eq.s32.totalorder %s26, 0
      %p131 = por %p129, %p130
      %p132 = scmp.ne.s32.totalorder %s120, %s121
      %p133 = scmp.eq.s32.totalorder %s27, 1
      %p134 = por %p132, %p133
      %p136 = scmp.ne.s32.totalorder %s121, %s135
      %p137 = scmp.eq.s32.totalorder %s27, 0
      %p138 = por %p136, %p137
      %s140 = sadd.s32 %s139, 1
      %p143 = scmp.eq.s32.totalorder %s21, 1
      %p144 = scmp.ne.s32.totalorder %s139, %s141
      %p145 = scmp.eq.s32.totalorder %s21, 0
      %p146 = por %p144, %p145
      %p147 = scmp.ne.s32.totalorder %s139, %s141
      %p148 = scmp.eq.s32.totalorder %s26, 1
      %p149 = por %p147, %p148
      %p150 = scmp.ne.s32.totalorder %s141, %s142
      %p151 = scmp.eq.s32.totalorder %s26, 0
      %p152 = por %p150, %p151
      %p153 = scmp.ne.s32.totalorder %s141, %s142
      %p154 = scmp.eq.s32.totalorder %s27, 1
      %p155 = por %p153, %p154
      %p157 = scmp.ne.s32.totalorder %s142, %s156
      %p158 = scmp.eq.s32.totalorder %s27, 0
      %p159 = por %p157, %p158
      %s160 = ssub.s32 %s21, %s28
      %p161 = scmp.eq.s32.totalorder %s160, 0
      %s163 = sadd.s32 %s162, 1
      %s164 = scalar_select %p161, %s162, %s163
      %p167 = pneg %p161
      %p168 = scmp.eq.s32.totalorder %s21, 1
      %p169 = por %p167, %p168
      %p170 = scmp.ne.s32.totalorder %s162, %s165
      %p171 = scmp.eq.s32.totalorder %s21, 0
      %p172 = por %p170, %p171
      %p173 = scmp.ne.s32.totalorder %s162, %s165
      %p174 = scmp.eq.s32.totalorder %s26, 1
      %p175 = por %p173, %p174
      %p176 = scmp.ne.s32.totalorder %s165, %s166
      %p177 = scmp.eq.s32.totalorder %s26, 0
      %p178 = por %p176, %p177
      %p179 = scmp.ne.s32.totalorder %s165, %s166
      %p180 = scmp.eq.s32.totalorder %s27, 1
      %p181 = por %p179, %p180
      %p183 = scmp.ne.s32.totalorder %s166, %s182
      %p184 = scmp.eq.s32.totalorder %s27, 0
      %p185 = por %p183, %p184
      %p186 = scmp.le.s32.totalorder 1, %s21
      %p187 = scmp.lt.s32.totalorder %s21, 3
      %p188 = pnand %p186, %p187
      %p189 = pneg %p188
      // Predicated region
      $region9: #{tpu_custom_call.1} parent=5 // pred_check
        _
      $region10: #{tpu_custom_call.1} parent=5 // pred_check_branch
        %191 = sbr.rel (%p188) target = $region12
      $region11: #{tpu_custom_call.1} parent=5 // pred_region
        %s192 = ssub.s32 %s21, 1
        // Predicated region
        $region13: #{tpu_custom_call.1} parent=11 // pred_check
          %p193 = pneg %p68
        $region14: #{tpu_custom_call.1} parent=11 // pred_check_branch
          %195 = sbr.rel (%p193) target = $region16
        $region15: #{tpu_custom_call.1} parent=11 // pred_region
          _
        $region16: #{tpu_custom_call.1} parent=11 // pred_fallthru
          _
        // Predicated region
        $region17: #{tpu_custom_call.1} parent=11 // pred_check
          %p196 = pneg %p89
        $region18: #{tpu_custom_call.1} parent=11 // pred_check_branch
          %198 = sbr.rel (%p196) target = $region20
        $region19: #{tpu_custom_call.1} parent=11 // pred_region
          %s200 = ssub.s32 1024, 1024
          %201 = vsyncadd [#allocation7], %s200
          %s202 = sshll.u32 [#allocation6], 4
          %s203 = int_to_ptr.vmem [resolvable:$true] %s202
          %208 = dma.hbm_to_vmem [thread:$0]  %s2, 1024, %s203, [#allocation7], 128, 128, 8
        $region20: #{tpu_custom_call.1} parent=11 // pred_fallthru
          _
        // Predicated region
        $region21: #{tpu_custom_call.1} parent=11 // pred_check
          %p209 = pneg %p110
        $region22: #{tpu_custom_call.1} parent=11 // pred_check_branch
          %211 = sbr.rel (%p209) target = $region24
        $region23: #{tpu_custom_call.1} parent=11 // pred_region
          _
        $region24: #{tpu_custom_call.1} parent=11 // pred_fallthru
          _
        // Predicated region
        $region25: #{tpu_custom_call.1} parent=11 // pred_check
          %p212 = pneg %p131
        $region26: #{tpu_custom_call.1} parent=11 // pred_check_branch
          %214 = sbr.rel (%p212) target = $region28
        $region27: #{tpu_custom_call.1} parent=11 // pred_region
          _
        $region28: #{tpu_custom_call.1} parent=11 // pred_fallthru
          _
        // Predicated region
        $region29: #{tpu_custom_call.1} parent=11 // pred_check
          %p215 = pneg %p152
        $region30: #{tpu_custom_call.1} parent=11 // pred_check_branch
          %217 = sbr.rel (%p215) target = $region32
        $region31: #{tpu_custom_call.1} parent=11 // pred_region
          _
        $region32: #{tpu_custom_call.1} parent=11 // pred_fallthru
          _
      $region12: #{tpu_custom_call.1} parent=5 // pred_fallthru
        _
      %p218 = scmp.lt.s32.totalorder %s21, 2
      // Predicated region
      $region33: #{tpu_custom_call.1} parent=5 // pred_check
        %p219 = pneg %p218
      $region34: #{tpu_custom_call.1} parent=5 // pred_check_branch
        %221 = sbr.rel (%p219) target = $region36
      $region35: #{tpu_custom_call.1} parent=5 // pred_region
        // Predicated region
        $region37: #{tpu_custom_call.1} parent=35 // pred_check
          %p222 = pneg %p41
        $region38: #{tpu_custom_call.1} parent=35 // pred_check_branch
          %224 = sbr.rel (%p222) target = $region40
        $region39: #{tpu_custom_call.1} parent=35 // pred_region
          %s225 = sand.u32 %s31, 1
          %s226 = scalar_lea.sflag [#allocation4], %s225
          %s227 = sand.u32 %s31, 1
          %s228 = smul.addr %s227, 8
          %s229 = scalar_lea.vmem [#allocation3], %s228
          %s230 = smul.u32 4, %s21
          %s232 = ssub.s32 128, 128
          %233 = vsyncadd %s226, %s232
          %s234 = smul.addr %s230, 32
          %s235 = scalar_lea.hbm %s0, %s234
          %s237 = sshll.u32 %s229, 4
          %s238 = int_to_ptr.vmem [resolvable:$true] %s237
          %240 = dma.hbm_to_vmem [thread:$0]  %s235, 128, %s238, %s226
        $region40: #{tpu_custom_call.1} parent=35 // pred_fallthru
          _
      $region36: #{tpu_custom_call.1} parent=5 // pred_fallthru
        _
      %p241 = scmp.le.s32.totalorder 1, %s21
      %p242 = scmp.lt.s32.totalorder %s21, 3
      %p243 = pnand %p241, %p242
      %p244 = pneg %p243
      // Predicated region
      $region41: #{tpu_custom_call.1} parent=5 // pred_check
        _
      $region42: #{tpu_custom_call.1} parent=5 // pred_check_branch
        %246 = sbr.rel (%p243) target = $region44
      $region43: #{tpu_custom_call.1} parent=5 // pred_region
        %s247 = ssub.s32 %s21, 1
        %s248 = sand.u32 %s34, 1
        %s249 = scalar_lea.sflag [#allocation4], %s248
        %s250 = sand.u32 %s34, 1
        %s251 = smul.addr %s250, 8
        %s252 = scalar_lea.vmem [#allocation3], %s251
        // Predicated region
        $region45: #{tpu_custom_call.1} parent=43 // pred_check
          %p253 = pneg %p47
        $region46: #{tpu_custom_call.1} parent=43 // pred_check_branch
          %255 = sbr.rel (%p253) target = $region48
        $region47: #{tpu_custom_call.1} parent=43 // pred_region
          %256 = dma.done %s249, 128
        $region48: #{tpu_custom_call.1} parent=43 // pred_fallthru
          _
        // Predicated region
        $region49: #{tpu_custom_call.1} parent=43 // pred_check
          %p257 = pneg %p89
        $region50: #{tpu_custom_call.1} parent=43 // pred_check_branch
          %259 = sbr.rel (%p257) target = $region52
        $region51: #{tpu_custom_call.1} parent=43 // pred_region
          %260 = dma.done [#allocation7], 1024
        $region52: #{tpu_custom_call.1} parent=43 // pred_fallthru
          _
        %s261 = sand.u32 %s34, 1
        %s262 = scalar_lea.sflag [#allocation4], %s261
        %s263 = sand.u32 %s34, 1
        %s264 = smul.addr %s263, 8
        %s265 = scalar_lea.vmem [#allocation3], %s264
        %p266 = pneg %p47
        %p267 = pneg %p44
        %p268 = pneg %p68
        %p269 = pneg %p65
        %p270 = pneg %p89
        %p271 = pneg %p86
        %p272 = pneg %p110
        %p273 = pneg %p107
        %p274 = pneg %p131
        %p275 = pneg %p128
        %p276 = pneg %p152
        %p277 = pneg %p149
        %p278 = pneg %p178
        %p279 = pneg %p175
        %s280 = sand.u32 %s165, 1
        %s281 = scalar_lea.sflag [#allocation5], %s280
        %s282 = sand.u32 %s165, 1
        %s283 = smul.addr %s282, 4
        %s284 = scalar_lea.vmem [#allocation8], %s283
        %s285 = smul.u32 4, %s26
        %s286 = smul.u32 4, %s26
        %v287 = vld [vmem:[%s252] sm:$0xff]
        %v288 = vlaneseq
        %v289 = vshrl.u32 %v288, 7
        %v290 = vadd.s32 %v289, 8
        %v291 = vadd.s32 %v289, 16
        %v292 = vadd.s32 %v289, 24
        %v293 = vadd.s32 %v289, 32
        %v294 = vadd.s32 %v289, 40
        %v295 = vadd.s32 %v289, 48
        %v296 = vadd.s32 %v289, 56
        %v297 = vlaneseq
        %v298 = vshrl.u32 %v297, 7
        %v299 = vsub.s32 0, %v298
        %v300 = vrot.slane %v287, %v299
        %v301 = vlaneseq
        %v302 = vshrl.u32 %v301, 7
        %v303 = vsub.s32 2, %v302
        %v304 = vrot.slane %v287, %v303
        %v305 = vlaneseq
        %v306 = vshrl.u32 %v305, 7
        %v307 = vsub.s32 4, %v306
        %v308 = vrot.slane %v287, %v307
        %v309 = vlaneseq
        %v310 = vshrl.u32 %v309, 7
        %v311 = vsub.s32 6, %v310
        %v312 = vrot.slane %v287, %v311
        %v313 = vlaneseq
        %v314 = vshrl.u32 %v313, 7
        %v315 = vsub.s32 0, %v314
        %v316 = vrot.slane %v300, %v315
        %v317 = vlaneseq
        %v318 = vshrl.u32 %v317, 7
        %v319 = vsub.s32 0, %v318
        %v320 = vrot.slane %v304, %v319
        %v321 = vlaneseq
        %v322 = vshrl.u32 %v321, 7
        %v323 = vsub.s32 0, %v322
        %v324 = vrot.slane %v308, %v323
        %v325 = vlaneseq
        %v326 = vshrl.u32 %v325, 7
        %v327 = vsub.s32 0, %v326
        %v328 = vrot.slane %v312, %v327
        %vm329 = vcmp.eq.s32.totalorder %v289, %v316
        %vm330 = vcmp.eq.s32.totalorder %v289, %v320
        %vm331 = vcmp.eq.s32.totalorder %v289, %v324
        %vm332 = vcmp.eq.s32.totalorder %v289, %v328
        %vm333 = vcmp.eq.s32.totalorder %v290, %v316
        %vm334 = vcmp.eq.s32.totalorder %v290, %v320
        %vm335 = vcmp.eq.s32.totalorder %v290, %v324
        %vm336 = vcmp.eq.s32.totalorder %v290, %v328
        %vm337 = vcmp.eq.s32.totalorder %v291, %v316
        %vm338 = vcmp.eq.s32.totalorder %v291, %v320
        %vm339 = vcmp.eq.s32.totalorder %v291, %v324
        %vm340 = vcmp.eq.s32.totalorder %v291, %v328
        %vm341 = vcmp.eq.s32.totalorder %v292, %v316
        %vm342 = vcmp.eq.s32.totalorder %v292, %v320
        %vm343 = vcmp.eq.s32.totalorder %v292, %v324
        %vm344 = vcmp.eq.s32.totalorder %v292, %v328
        %vm345 = vcmp.eq.s32.totalorder %v293, %v316
        %vm346 = vcmp.eq.s32.totalorder %v293, %v320
        %vm347 = vcmp.eq.s32.totalorder %v293, %v324
        %vm348 = vcmp.eq.s32.totalorder %v293, %v328
        %vm349 = vcmp.eq.s32.totalorder %v294, %v316
        %vm350 = vcmp.eq.s32.totalorder %v294, %v320
        %vm351 = vcmp.eq.s32.totalorder %v294, %v324
        %vm352 = vcmp.eq.s32.totalorder %v294, %v328
        %vm353 = vcmp.eq.s32.totalorder %v295, %v316
        %vm354 = vcmp.eq.s32.totalorder %v295, %v320
        %vm355 = vcmp.eq.s32.totalorder %v295, %v324
        %vm356 = vcmp.eq.s32.totalorder %v295, %v328
        %vm357 = vcmp.eq.s32.totalorder %v296, %v316
        %vm358 = vcmp.eq.s32.totalorder %v296, %v320
        %vm359 = vcmp.eq.s32.totalorder %v296, %v324
        %vm360 = vcmp.eq.s32.totalorder %v296, %v328
        %v361 = vsel %vm329, 1, 0
        %v362 = vsel %vm330, 1, 0
        %v363 = vsel %vm331, 1, 0
        %v364 = vsel %vm332, 1, 0
        %v365 = vsel %vm333, 1, 0
        %v366 = vsel %vm334, 1, 0
        %v367 = vsel %vm335, 1, 0
        %v368 = vsel %vm336, 1, 0
        %v369 = vsel %vm337, 1, 0
        %v370 = vsel %vm338, 1, 0
        %v371 = vsel %vm339, 1, 0
        %v372 = vsel %vm340, 1, 0
        %v373 = vsel %vm341, 1, 0
        %v374 = vsel %vm342, 1, 0
        %v375 = vsel %vm343, 1, 0
        %v376 = vsel %vm344, 1, 0
        %v377 = vsel %vm345, 1, 0
        %v378 = vsel %vm346, 1, 0
        %v379 = vsel %vm347, 1, 0
        %v380 = vsel %vm348, 1, 0
        %v381 = vsel %vm349, 1, 0
        %v382 = vsel %vm350, 1, 0
        %v383 = vsel %vm351, 1, 0
        %v384 = vsel %vm352, 1, 0
        %v385 = vsel %vm353, 1, 0
        %v386 = vsel %vm354, 1, 0
        %v387 = vsel %vm355, 1, 0
        %v388 = vsel %vm356, 1, 0
        %v389 = vsel %vm357, 1, 0
        %v390 = vsel %vm358, 1, 0
        %v391 = vsel %vm359, 1, 0
        %v392 = vsel %vm360, 1, 0
        %v393 = vcvt.s32.f32 %v361
        %v394 = vcvt.s32.f32 %v362
        %v395 = vcvt.s32.f32 %v363
        %v396 = vcvt.s32.f32 %v364
        %v397 = vcvt.s32.f32 %v365
        %v398 = vcvt.s32.f32 %v366
        %v399 = vcvt.s32.f32 %v367
        %v400 = vcvt.s32.f32 %v368
        %v401 = vcvt.s32.f32 %v369
        %v402 = vcvt.s32.f32 %v370
        %v403 = vcvt.s32.f32 %v371
        %v404 = vcvt.s32.f32 %v372
        %v405 = vcvt.s32.f32 %v373
        %v406 = vcvt.s32.f32 %v374
        %v407 = vcvt.s32.f32 %v375
        %v408 = vcvt.s32.f32 %v376
        %v409 = vcvt.s32.f32 %v377
        %v410 = vcvt.s32.f32 %v378
        %v411 = vcvt.s32.f32 %v379
        %v412 = vcvt.s32.f32 %v380
        %v413 = vcvt.s32.f32 %v381
        %v414 = vcvt.s32.f32 %v382
        %v415 = vcvt.s32.f32 %v383
        %v416 = vcvt.s32.f32 %v384
        %v417 = vcvt.s32.f32 %v385
        %v418 = vcvt.s32.f32 %v386
        %v419 = vcvt.s32.f32 %v387
        %v420 = vcvt.s32.f32 %v388
        %v421 = vcvt.s32.f32 %v389
        %v422 = vcvt.s32.f32 %v390
        %v423 = vcvt.s32.f32 %v391
        %v424 = vcvt.s32.f32 %v392
        %v425 = vld [vmem:[%s1] sm:$0xff]
        %v426 = vld [vmem:[%s1 + $0x8] sm:$0xff]
        %v427 = vld [vmem:[%s1 + $0x10] sm:$0xff]
        %v428 = vld [vmem:[%s1 + $0x18] sm:$0xff]
        %v429 = vld [vmem:[%s1 + $0x20] sm:$0xff]
        %v430 = vld [vmem:[%s1 + $0x28] sm:$0xff]
        %v431 = vld [vmem:[%s1 + $0x30] sm:$0xff]
        %v432 = vld [vmem:[%s1 + $0x38] sm:$0xff]
        %v433 = vlaneseq
        %v434 = vshrl.u32 %v433, 7
        %v435 = vsub.s32 1, %v434
        %v436 = vrot.slane %v287, %v435
        %v437 = vlaneseq
        %v438 = vshrl.u32 %v437, 7
        %v439 = vsub.s32 3, %v438
        %v440 = vrot.slane %v287, %v439
        %v441 = vlaneseq
        %v442 = vshrl.u32 %v441, 7
        %v443 = vsub.s32 5, %v442
        %v444 = vrot.slane %v287, %v443
        %v445 = vlaneseq
        %v446 = vshrl.u32 %v445, 7
        %v447 = vsub.s32 7, %v446
        %v448 = vrot.slane %v287, %v447
        %v449 = vlaneseq
        %v450 = vshrl.u32 %v449, 7
        %v451 = vsub.s32 1, %v450
        %v452 = vrot.slane %v436, %v451
        %v453 = vlaneseq
        %v454 = vshrl.u32 %v453, 7
        %v455 = vsub.s32 1, %v454
        %v456 = vrot.slane %v440, %v455
        %v457 = vlaneseq
        %v458 = vshrl.u32 %v457, 7
        %v459 = vsub.s32 1, %v458
        %v460 = vrot.slane %v444, %v459
        %v461 = vlaneseq
        %v462 = vshrl.u32 %v461, 7
        %v463 = vsub.s32 1, %v462
        %v464 = vrot.slane %v448, %v463
        %vm465 = vcmp.eq.s32.totalorder %v289, %v452
        %vm466 = vcmp.eq.s32.totalorder %v289, %v456
        %vm467 = vcmp.eq.s32.totalorder %v289, %v460
        %vm468 = vcmp.eq.s32.totalorder %v289, %v464
        %vm469 = vcmp.eq.s32.totalorder %v290, %v452
        %vm470 = vcmp.eq.s32.totalorder %v290, %v456
        %vm471 = vcmp.eq.s32.totalorder %v290, %v460
        %vm472 = vcmp.eq.s32.totalorder %v290, %v464
        %vm473 = vcmp.eq.s32.totalorder %v291, %v452
        %vm474 = vcmp.eq.s32.totalorder %v291, %v456
        %vm475 = vcmp.eq.s32.totalorder %v291, %v460
        %vm476 = vcmp.eq.s32.totalorder %v291, %v464
        %vm477 = vcmp.eq.s32.totalorder %v292, %v452
        %vm478 = vcmp.eq.s32.totalorder %v292, %v456
        %vm479 = vcmp.eq.s32.totalorder %v292, %v460
        %vm480 = vcmp.eq.s32.totalorder %v292, %v464
        %vm481 = vcmp.eq.s32.totalorder %v293, %v452
        %vm482 = vcmp.eq.s32.totalorder %v293, %v456
        %vm483 = vcmp.eq.s32.totalorder %v293, %v460
        %vm484 = vcmp.eq.s32.totalorder %v293, %v464
        %vm485 = vcmp.eq.s32.totalorder %v294, %v452
        %vm486 = vcmp.eq.s32.totalorder %v294, %v456
        %vm487 = vcmp.eq.s32.totalorder %v294, %v460
        %vm488 = vcmp.eq.s32.totalorder %v294, %v464
        %vm489 = vcmp.eq.s32.totalorder %v295, %v452
        %vm490 = vcmp.eq.s32.totalorder %v295, %v456
        %vm491 = vcmp.eq.s32.totalorder %v295, %v460
        %vm492 = vcmp.eq.s32.totalorder %v295, %v464
        %vm493 = vcmp.eq.s32.totalorder %v296, %v452
        %vm494 = vcmp.eq.s32.totalorder %v296, %v456
        %vm495 = vcmp.eq.s32.totalorder %v296, %v460
        %vm496 = vcmp.eq.s32.totalorder %v296, %v464
        %v497 = vsel %vm465, 1, 0
        %v498 = vsel %vm466, 1, 0
        %v499 = vsel %vm467, 1, 0
        %v500 = vsel %vm468, 1, 0
        %v501 = vsel %vm469, 1, 0
        %v502 = vsel %vm470, 1, 0
        %v503 = vsel %vm471, 1, 0
        %v504 = vsel %vm472, 1, 0
        %v505 = vsel %vm473, 1, 0
        %v506 = vsel %vm474, 1, 0
        %v507 = vsel %vm475, 1, 0
        %v508 = vsel %vm476, 1, 0
        %v509 = vsel %vm477, 1, 0
        %v510 = vsel %vm478, 1, 0
        %v511 = vsel %vm479, 1, 0
        %v512 = vsel %vm480, 1, 0
        %v513 = vsel %vm481, 1, 0
        %v514 = vsel %vm482, 1, 0
        %v515 = vsel %vm483, 1, 0
        %v516 = vsel %vm484, 1, 0
        %v517 = vsel %vm485, 1, 0
        %v518 = vsel %vm486, 1, 0
        %v519 = vsel %vm487, 1, 0
        %v520 = vsel %vm488, 1, 0
        %v521 = vsel %vm489, 1, 0
        %v522 = vsel %vm490, 1, 0
        %v523 = vsel %vm491, 1, 0
        %v524 = vsel %vm492, 1, 0
        %v525 = vsel %vm493, 1, 0
        %v526 = vsel %vm494, 1, 0
        %v527 = vsel %vm495, 1, 0
        %v528 = vsel %vm496, 1, 0
        %v529 = vcvt.s32.f32 %v497
        %v530 = vcvt.s32.f32 %v498
        %v531 = vcvt.s32.f32 %v499
        %v532 = vcvt.s32.f32 %v500
        %v533 = vcvt.s32.f32 %v501
        %v534 = vcvt.s32.f32 %v502
        %v535 = vcvt.s32.f32 %v503
        %v536 = vcvt.s32.f32 %v504
        %v537 = vcvt.s32.f32 %v505
        %v538 = vcvt.s32.f32 %v506
        %v539 = vcvt.s32.f32 %v507
        %v540 = vcvt.s32.f32 %v508
        %v541 = vcvt.s32.f32 %v509
        %v542 = vcvt.s32.f32 %v510
        %v543 = vcvt.s32.f32 %v511
        %v544 = vcvt.s32.f32 %v512
        %v545 = vcvt.s32.f32 %v513
        %v546 = vcvt.s32.f32 %v514
        %v547 = vcvt.s32.f32 %v515
        %v548 = vcvt.s32.f32 %v516
        %v549 = vcvt.s32.f32 %v517
        %v550 = vcvt.s32.f32 %v518
        %v551 = vcvt.s32.f32 %v519
        %v552 = vcvt.s32.f32 %v520
        %v553 = vcvt.s32.f32 %v521
        %v554 = vcvt.s32.f32 %v522
        %v555 = vcvt.s32.f32 %v523
        %v556 = vcvt.s32.f32 %v524
        %v557 = vcvt.s32.f32 %v525
        %v558 = vcvt.s32.f32 %v526
        %v559 = vcvt.s32.f32 %v527
        %v560 = vcvt.s32.f32 %v528
        %v561 = vld [vmem:[#allocation6] sm:$0xff]
        %v562 = vld [vmem:[#allocation6 + $0x8] sm:$0xff]
        %v563 = vld [vmem:[#allocation6 + $0x10] sm:$0xff]
        %v564 = vld [vmem:[#allocation6 + $0x18] sm:$0xff]
        %v565 = vld [vmem:[#allocation6 + $0x20] sm:$0xff]
        %v566 = vld [vmem:[#allocation6 + $0x28] sm:$0xff]
        %v567 = vld [vmem:[#allocation6 + $0x30] sm:$0xff]
        %v568 = vld [vmem:[#allocation6 + $0x38] sm:$0xff]
        %vm569 = vcmask 523264
        %v571 = vsel %vm569, %v561, 0
        %v574 = vsel %vm569, %v562, 0
        %v577 = vsel %vm569, %v563, 0
        %v580 = vsel %vm569, %v564, 0
        %v583 = vsel %vm569, %v565, 0
        %v586 = vsel %vm569, %v566, 0
        %v589 = vsel %vm569, %v567, 0
        %v592 = vsel %vm569, %v568, 0
        %594 = vmatprep.subr.mxu0 %v530
        %595 = vmatpush1.msra.mxu0 %v529
        %596 = vmatprep.subr.mxu0 %v534
        %597 = vmatpush1.msra.mxu0 %v533
        %598 = vmatprep.subr.mxu0 %v538
        %599 = vmatpush1.msra.mxu0 %v537
        %600 = vmatprep.subr.mxu0 %v542
        %601 = vmatpush1.msra.mxu0 %v541
        %602 = vmatprep.subr.mxu0 %v546
        %603 = vmatpush1.msra.mxu0 %v545
        %604 = vmatprep.subr.mxu0 %v550
        %605 = vmatpush1.msra.mxu0 %v549
        %606 = vmatprep.subr.mxu0 %v554
        %607 = vmatpush1.msra.mxu0 %v553
        %608 = vmatprep.subr.mxu0 %v558
        %609 = vmatpush1.msra.mxu0 %v557
        %610 = vmatprep.subr.mxu0 0.0
        %611 = vmatpush1.msra.mxu0 0.0
        %612 = vmatprep.subr.mxu0 0.0
        %613 = vmatpush1.msra.mxu0 0.0
        %614 = vmatprep.subr.mxu0 0.0
        %615 = vmatpush1.msra.mxu0 0.0
        %616 = vmatprep.subr.mxu0 0.0
        %617 = vmatpush1.msra.mxu0 0.0
        %618 = vmatprep.subr.mxu0 0.0
        %619 = vmatpush1.msra.mxu0 0.0
        %620 = vmatprep.subr.mxu0 0.0
        %621 = vmatpush1.msra.mxu0 0.0
        %622 = vmatprep.subr.mxu0 0.0
        %623 = vmatpush1.msra.mxu0 0.0
        %624 = vmatprep.subr.mxu0 0.0
        %625 = vmatpush1.msra.mxu0 0.0
        %626 = vmatprep.subr.mxu0 0.0
        %627 = vmatpush1.msra.mxu0 0.0
        %628 = vmatprep.subr.mxu0 0.0
        %629 = vmatpush1.msra.mxu0 0.0
        %630 = vmatprep.subr.mxu0 0.0
        %631 = vmatpush1.msra.mxu0 0.0
        %632 = vmatprep.subr.mxu0 0.0
        %633 = vmatpush1.msra.mxu0 0.0
        %634 = vmatprep.subr.mxu0 0.0
        %635 = vmatpush1.msra.mxu0 0.0
        %636 = vmatprep.subr.mxu0 0.0
        %637 = vmatpush1.msra.mxu0 0.0
        %638 = vmatprep.subr.mxu0 0.0
        %639 = vmatpush1.msra.mxu0 0.0
        %640 = vmatprep.subr.mxu0 0.0
        %641 = vmatpush1.msra.mxu0 0.0
        %642 = vmatprep.subr.mxu0 0.0
        %643 = vmatpush1.msra.mxu0 0.0
        %644 = vmatprep.subr.mxu0 0.0
        %645 = vmatpush1.msra.mxu0 0.0
        %646 = vmatprep.subr.mxu0 0.0
        %647 = vmatpush1.msra.mxu0 0.0
        %648 = vmatprep.subr.mxu0 0.0
        %649 = vmatpush1.msra.mxu0 0.0
        %650 = vmatprep.subr.mxu0 0.0
        %651 = vmatpush1.msra.mxu0 0.0
        %652 = vmatprep.subr.mxu0 0.0
        %653 = vmatpush1.msra.mxu0 0.0
        %654 = vmatprep.subr.mxu0 0.0
        %655 = vmatpush1.msra.mxu0 0.0
        %656 = vmatprep.subr.mxu0 0.0
        %657 = vmatpush1.msra.mxu0 0.0
        %658 = vmatprep.mubr.f32.mxu0 0.0
        %659 = vmatmul.mubr.f32.gmra.mrb[0].mxu0 %v571
        %v660 = vpop.f32.mrb[0].mxu0
        %v661 = vadd.f32 0.0, %v660
        %v662 = vpop.f32.mrb[0].mxu0
        %v663 = vadd.f32 0.0, %v662
        %664 = vmatprep.mubr.f32.mxu0 0.0
        %665 = vmatmul.mubr.f32.gmra.mrb[0].mxu0 %v574
        %v666 = vpop.f32.mrb[0].mxu0
        %v667 = vadd.f32 0.0, %v666
        %v668 = vpop.f32.mrb[0].mxu0
        %v669 = vadd.f32 0.0, %v668
        %670 = vmatprep.mubr.f32.mxu0 0.0
        %671 = vmatmul.mubr.f32.gmra.mrb[0].mxu0 %v577
        %v672 = vpop.f32.mrb[0].mxu0
        %v673 = vadd.f32 0.0, %v672
        %v674 = vpop.f32.mrb[0].mxu0
        %v675 = vadd.f32 0.0, %v674
        %676 = vmatprep.mubr.f32.mxu0 0.0
        %677 = vmatmul.mubr.f32.gmra.mrb[0].mxu0 %v580
        %v678 = vpop.f32.mrb[0].mxu0
        %v679 = vadd.f32 0.0, %v678
        %v680 = vpop.f32.mrb[0].mxu0
        %v681 = vadd.f32 0.0, %v680
        %682 = vmatprep.mubr.f32.mxu0 0.0
        %683 = vmatmul.mubr.f32.gmra.mrb[0].mxu0 %v583
        %v684 = vpop.f32.mrb[0].mxu0
        %v685 = vadd.f32 0.0, %v684
        %v686 = vpop.f32.mrb[0].mxu0
        %v687 = vadd.f32 0.0, %v686
        %688 = vmatprep.mubr.f32.mxu0 0.0
        %689 = vmatmul.mubr.f32.gmra.mrb[0].mxu0 %v586
        %v690 = vpop.f32.mrb[0].mxu0
        %v691 = vadd.f32 0.0, %v690
        %v692 = vpop.f32.mrb[0].mxu0
        %v693 = vadd.f32 0.0, %v692
        %694 = vmatprep.mubr.f32.mxu0 0.0
        %695 = vmatmul.mubr.f32.gmra.mrb[0].mxu0 %v589
        %v696 = vpop.f32.mrb[0].mxu0
        %v697 = vadd.f32 0.0, %v696
        %v698 = vpop.f32.mrb[0].mxu0
        %v699 = vadd.f32 0.0, %v698
        %700 = vmatprep.mubr.f32.mxu0 0.0
        %701 = vmatmul.mubr.f32.gmra.mrb[0].mxu0 %v592
        %v702 = vpop.f32.mrb[0].mxu0
        %v703 = vadd.f32 0.0, %v702
        %v704 = vpop.f32.mrb[0].mxu0
        %v705 = vadd.f32 0.0, %v704
        %706 = vdwg.mxu0
        %707 = vmatprep.subr.mxu0 %v532
        %708 = vmatpush1.msra.mxu0 %v531
        %709 = vmatprep.subr.mxu0 %v536
        %710 = vmatpush1.msra.mxu0 %v535
        %711 = vmatprep.subr.mxu0 %v540
        %712 = vmatpush1.msra.mxu0 %v539
        %713 = vmatprep.subr.mxu0 %v544
        %714 = vmatpush1.msra.mxu0 %v543
        %715 = vmatprep.subr.mxu0 %v548
        %716 = vmatpush1.msra.mxu0 %v547
        %717 = vmatprep.subr.mxu0 %v552
        %718 = vmatpush1.msra.mxu0 %v551
        %719 = vmatprep.subr.mxu0 %v556
        %720 = vmatpush1.msra.mxu0 %v555
        %721 = vmatprep.subr.mxu0 %v560
        %722 = vmatpush1.msra.mxu0 %v559
        %723 = vmatprep.subr.mxu0 0.0
        %724 = vmatpush1.msra.mxu0 0.0
        %725 = vmatprep.subr.mxu0 0.0
        %726 = vmatpush1.msra.mxu0 0.0
        %727 = vmatprep.subr.mxu0 0.0
        %728 = vmatpush1.msra.mxu0 0.0
        %729 = vmatprep.subr.mxu0 0.0
        %730 = vmatpush1.msra.mxu0 0.0
        %731 = vmatprep.subr.mxu0 0.0
        %732 = vmatpush1.msra.mxu0 0.0
        %733 = vmatprep.subr.mxu0 0.0
        %734 = vmatpush1.msra.mxu0 0.0
        %735 = vmatprep.subr.mxu0 0.0
        %736 = vmatpush1.msra.mxu0 0.0
        %737 = vmatprep.subr.mxu0 0.0
        %738 = vmatpush1.msra.mxu0 0.0
        %739 = vmatprep.subr.mxu0 0.0
        %740 = vmatpush1.msra.mxu0 0.0
        %741 = vmatprep.subr.mxu0 0.0
        %742 = vmatpush1.msra.mxu0 0.0
        %743 = vmatprep.subr.mxu0 0.0
        %744 = vmatpush1.msra.mxu0 0.0
        %745 = vmatprep.subr.mxu0 0.0
        %746 = vmatpush1.msra.mxu0 0.0
        %747 = vmatprep.subr.mxu0 0.0
        %748 = vmatpush1.msra.mxu0 0.0
        %749 = vmatprep.subr.mxu0 0.0
        %750 = vmatpush1.msra.mxu0 0.0
        %751 = vmatprep.subr.mxu0 0.0
        %752 = vmatpush1.msra.mxu0 0.0
        %753 = vmatprep.subr.mxu0 0.0
        %754 = vmatpush1.msra.mxu0 0.0
        %755 = vmatprep.subr.mxu0 0.0
        %756 = vmatpush1.msra.mxu0 0.0
        %757 = vmatprep.subr.mxu0 0.0
        %758 = vmatpush1.msra.mxu0 0.0
        %759 = vmatprep.subr.mxu0 0.0
        %760 = vmatpush1.msra.mxu0 0.0
        %761 = vmatprep.subr.mxu0 0.0
        %762 = vmatpush1.msra.mxu0 0.0
        %763 = vmatprep.subr.mxu0 0.0
        %764 = vmatpush1.msra.mxu0 0.0
        %765 = vmatprep.subr.mxu0 0.0
        %766 = vmatpush1.msra.mxu0 0.0
        %767 = vmatprep.subr.mxu0 0.0
        %768 = vmatpush1.msra.mxu0 0.0
        %769 = vmatprep.subr.mxu0 0.0
        %770 = vmatpush1.msra.mxu0 0.0
        %771 = vmatprep.mubr.f32.mxu0 0.0
        %772 = vmatmul.mubr.f32.gmra.mrb[0].mxu0 %v571
        %v773 = vpop.f32.mrb[0].mxu0
        %v774 = vadd.f32 0.0, %v773
        %v775 = vpop.f32.mrb[0].mxu0
        %v776 = vadd.f32 0.0, %v775
        %777 = vmatprep.mubr.f32.mxu0 0.0
        %778 = vmatmul.mubr.f32.gmra.mrb[0].mxu0 %v574
        %v779 = vpop.f32.mrb[0].mxu0
        %v780 = vadd.f32 0.0, %v779
        %v781 = vpop.f32.mrb[0].mxu0
        %v782 = vadd.f32 0.0, %v781
        %783 = vmatprep.mubr.f32.mxu0 0.0
        %784 = vmatmul.mubr.f32.gmra.mrb[0].mxu0 %v577
        %v785 = vpop.f32.mrb[0].mxu0
        %v786 = vadd.f32 0.0, %v785
        %v787 = vpop.f32.mrb[0].mxu0
        %v788 = vadd.f32 0.0, %v787
        %789 = vmatprep.mubr.f32.mxu0 0.0
        %790 = vmatmul.mubr.f32.gmra.mrb[0].mxu0 %v580
        %v791 = vpop.f32.mrb[0].mxu0
        %v792 = vadd.f32 0.0, %v791
        %v793 = vpop.f32.mrb[0].mxu0
        %v794 = vadd.f32 0.0, %v793
        %795 = vmatprep.mubr.f32.mxu0 0.0
        %796 = vmatmul.mubr.f32.gmra.mrb[0].mxu0 %v583
        %v797 = vpop.f32.mrb[0].mxu0
        %v798 = vadd.f32 0.0, %v797
        %v799 = vpop.f32.mrb[0].mxu0
        %v800 = vadd.f32 0.0, %v799
        %801 = vmatprep.mubr.f32.mxu0 0.0
        %802 = vmatmul.mubr.f32.gmra.mrb[0].mxu0 %v586
        %v803 = vpop.f32.mrb[0].mxu0
        %v804 = vadd.f32 0.0, %v803
        %v805 = vpop.f32.mrb[0].mxu0
        %v806 = vadd.f32 0.0, %v805
        %807 = vmatprep.mubr.f32.mxu0 0.0
        %808 = vmatmul.mubr.f32.gmra.mrb[0].mxu0 %v589
        %v809 = vpop.f32.mrb[0].mxu0
        %v810 = vadd.f32 0.0, %v809
        %v811 = vpop.f32.mrb[0].mxu0
        %v812 = vadd.f32 0.0, %v811
        %813 = vmatprep.mubr.f32.mxu0 0.0
        %814 = vmatmul.mubr.f32.gmra.mrb[0].mxu0 %v592
        %v815 = vpop.f32.mrb[0].mxu0
        %v816 = vadd.f32 0.0, %v815
        %v817 = vpop.f32.mrb[0].mxu0
        %v818 = vadd.f32 0.0, %v817
        %819 = vdwg.mxu0
        %v821 = vsel %vm569, %v425, 0
        %v824 = vsel %vm569, %v426, 0
        %v827 = vsel %vm569, %v427, 0
        %v830 = vsel %vm569, %v428, 0
        %v833 = vsel %vm569, %v429, 0
        %v836 = vsel %vm569, %v430, 0
        %v839 = vsel %vm569, %v431, 0
        %v842 = vsel %vm569, %v432, 0
        %844 = vmatprep.subr.mxu0 %v394
        %845 = vmatpush1.msra.mxu0 %v393
        %846 = vmatprep.subr.mxu0 %v398
        %847 = vmatpush1.msra.mxu0 %v397
        %848 = vmatprep.subr.mxu0 %v402
        %849 = vmatpush1.msra.mxu0 %v401
        %850 = vmatprep.subr.mxu0 %v406
        %851 = vmatpush1.msra.mxu0 %v405
        %852 = vmatprep.subr.mxu0 %v410
        %853 = vmatpush1.msra.mxu0 %v409
        %854 = vmatprep.subr.mxu0 %v414
        %855 = vmatpush1.msra.mxu0 %v413
        %856 = vmatprep.subr.mxu0 %v418
        %857 = vmatpush1.msra.mxu0 %v417
        %858 = vmatprep.subr.mxu0 %v422
        %859 = vmatpush1.msra.mxu0 %v421
        %860 = vmatprep.subr.mxu0 0.0
        %861 = vmatpush1.msra.mxu0 0.0
        %862 = vmatprep.subr.mxu0 0.0
        %863 = vmatpush1.msra.mxu0 0.0
        %864 = vmatprep.subr.mxu0 0.0
        %865 = vmatpush1.msra.mxu0 0.0
        %866 = vmatprep.subr.mxu0 0.0
        %867 = vmatpush1.msra.mxu0 0.0
        %868 = vmatprep.subr.mxu0 0.0
        %869 = vmatpush1.msra.mxu0 0.0
        %870 = vmatprep.subr.mxu0 0.0
        %871 = vmatpush1.msra.mxu0 0.0
        %872 = vmatprep.subr.mxu0 0.0
        %873 = vmatpush1.msra.mxu0 0.0
        %874 = vmatprep.subr.mxu0 0.0
        %875 = vmatpush1.msra.mxu0 0.0
        %876 = vmatprep.subr.mxu0 0.0
        %877 = vmatpush1.msra.mxu0 0.0
        %878 = vmatprep.subr.mxu0 0.0
        %879 = vmatpush1.msra.mxu0 0.0
        %880 = vmatprep.subr.mxu0 0.0
        %881 = vmatpush1.msra.mxu0 0.0
        %882 = vmatprep.subr.mxu0 0.0
        %883 = vmatpush1.msra.mxu0 0.0
        %884 = vmatprep.subr.mxu0 0.0
        %885 = vmatpush1.msra.mxu0 0.0
        %886 = vmatprep.subr.mxu0 0.0
        %887 = vmatpush1.msra.mxu0 0.0
        %888 = vmatprep.subr.mxu0 0.0
        %889 = vmatpush1.msra.mxu0 0.0
        %890 = vmatprep.subr.mxu0 0.0
        %891 = vmatpush1.msra.mxu0 0.0
        %892 = vmatprep.subr.mxu0 0.0
        %893 = vmatpush1.msra.mxu0 0.0
        %894 = vmatprep.subr.mxu0 0.0
        %895 = vmatpush1.msra.mxu0 0.0
        %896 = vmatprep.subr.mxu0 0.0
        %897 = vmatpush1.msra.mxu0 0.0
        %898 = vmatprep.subr.mxu0 0.0
        %899 = vmatpush1.msra.mxu0 0.0
        %900 = vmatprep.subr.mxu0 0.0
        %901 = vmatpush1.msra.mxu0 0.0
        %902 = vmatprep.subr.mxu0 0.0
        %903 = vmatpush1.msra.mxu0 0.0
        %904 = vmatprep.subr.mxu0 0.0
        %905 = vmatpush1.msra.mxu0 0.0
        %906 = vmatprep.subr.mxu0 0.0
        %907 = vmatpush1.msra.mxu0 0.0
        %908 = vmatprep.mubr.f32.mxu0 0.0
        %909 = vmatmul.mubr.f32.gmra.mrb[0].mxu0 %v821
        %v910 = vpop.f32.mrb[0].mxu0
        %v911 = vadd.f32 %v661, %v910
        %v912 = vpop.f32.mrb[0].mxu0
        %v913 = vadd.f32 %v663, %v912
        %914 = vmatprep.mubr.f32.mxu0 0.0
        %915 = vmatmul.mubr.f32.gmra.mrb[0].mxu0 %v824
        %v916 = vpop.f32.mrb[0].mxu0
        %v917 = vadd.f32 %v667, %v916
        %v918 = vpop.f32.mrb[0].mxu0
        %v919 = vadd.f32 %v669, %v918
        %920 = vmatprep.mubr.f32.mxu0 0.0
        %921 = vmatmul.mubr.f32.gmra.mrb[0].mxu0 %v827
        %v922 = vpop.f32.mrb[0].mxu0
        %v923 = vadd.f32 %v673, %v922
        %v924 = vpop.f32.mrb[0].mxu0
        %v925 = vadd.f32 %v675, %v924
        %926 = vmatprep.mubr.f32.mxu0 0.0
        %927 = vmatmul.mubr.f32.gmra.mrb[0].mxu0 %v830
        %v928 = vpop.f32.mrb[0].mxu0
        %v929 = vadd.f32 %v679, %v928
        %v930 = vpop.f32.mrb[0].mxu0
        %v931 = vadd.f32 %v681, %v930
        %932 = vmatprep.mubr.f32.mxu0 0.0
        %933 = vmatmul.mubr.f32.gmra.mrb[0].mxu0 %v833
        %v934 = vpop.f32.mrb[0].mxu0
        %v935 = vadd.f32 %v685, %v934
        %v936 = vpop.f32.mrb[0].mxu0
        %v937 = vadd.f32 %v687, %v936
        %938 = vmatprep.mubr.f32.mxu0 0.0
        %939 = vmatmul.mubr.f32.gmra.mrb[0].mxu0 %v836
        %v940 = vpop.f32.mrb[0].mxu0
        %v941 = vadd.f32 %v691, %v940
        %v942 = vpop.f32.mrb[0].mxu0
        %v943 = vadd.f32 %v693, %v942
        %944 = vmatprep.mubr.f32.mxu0 0.0
        %945 = vmatmul.mubr.f32.gmra.mrb[0].mxu0 %v839
        %v946 = vpop.f32.mrb[0].mxu0
        %v947 = vadd.f32 %v697, %v946
        %v948 = vpop.f32.mrb[0].mxu0
        %v949 = vadd.f32 %v699, %v948
        %950 = vmatprep.mubr.f32.mxu0 0.0
        %951 = vmatmul.mubr.f32.gmra.mrb[0].mxu0 %v842
        %v952 = vpop.f32.mrb[0].mxu0
        %v953 = vadd.f32 %v703, %v952
        %v954 = vpop.f32.mrb[0].mxu0
        %v955 = vadd.f32 %v705, %v954
        %956 = vdwg.mxu0
        %957 = vmatprep.subr.mxu0 %v396
        %958 = vmatpush1.msra.mxu0 %v395
        %959 = vmatprep.subr.mxu0 %v400
        %960 = vmatpush1.msra.mxu0 %v399
        %961 = vmatprep.subr.mxu0 %v404
        %962 = vmatpush1.msra.mxu0 %v403
        %963 = vmatprep.subr.mxu0 %v408
        %964 = vmatpush1.msra.mxu0 %v407
        %965 = vmatprep.subr.mxu0 %v412
        %966 = vmatpush1.msra.mxu0 %v411
        %967 = vmatprep.subr.mxu0 %v416
        %968 = vmatpush1.msra.mxu0 %v415
        %969 = vmatprep.subr.mxu0 %v420
        %970 = vmatpush1.msra.mxu0 %v419
        %971 = vmatprep.subr.mxu0 %v424
        %972 = vmatpush1.msra.mxu0 %v423
        %973 = vmatprep.subr.mxu0 0.0
        %974 = vmatpush1.msra.mxu0 0.0
        %975 = vmatprep.subr.mxu0 0.0
        %976 = vmatpush1.msra.mxu0 0.0
        %977 = vmatprep.subr.mxu0 0.0
        %978 = vmatpush1.msra.mxu0 0.0
        %979 = vmatprep.subr.mxu0 0.0
        %980 = vmatpush1.msra.mxu0 0.0
        %981 = vmatprep.subr.mxu0 0.0
        %982 = vmatpush1.msra.mxu0 0.0
        %983 = vmatprep.subr.mxu0 0.0
        %984 = vmatpush1.msra.mxu0 0.0
        %985 = vmatprep.subr.mxu0 0.0
        %986 = vmatpush1.msra.mxu0 0.0
        %987 = vmatprep.subr.mxu0 0.0
        %988 = vmatpush1.msra.mxu0 0.0
        %989 = vmatprep.subr.mxu0 0.0
        %990 = vmatpush1.msra.mxu0 0.0
        %991 = vmatprep.subr.mxu0 0.0
        %992 = vmatpush1.msra.mxu0 0.0
        %993 = vmatprep.subr.mxu0 0.0
        %994 = vmatpush1.msra.mxu0 0.0
        %995 = vmatprep.subr.mxu0 0.0
        %996 = vmatpush1.msra.mxu0 0.0
        %997 = vmatprep.subr.mxu0 0.0
        %998 = vmatpush1.msra.mxu0 0.0
        %999 = vmatprep.subr.mxu0 0.0
        %1000 = vmatpush1.msra.mxu0 0.0
        %1001 = vmatprep.subr.mxu0 0.0
        %1002 = vmatpush1.msra.mxu0 0.0
        %1003 = vmatprep.subr.mxu0 0.0
        %1004 = vmatpush1.msra.mxu0 0.0
        %1005 = vmatprep.subr.mxu0 0.0
        %1006 = vmatpush1.msra.mxu0 0.0
        %1007 = vmatprep.subr.mxu0 0.0
        %1008 = vmatpush1.msra.mxu0 0.0
        %1009 = vmatprep.subr.mxu0 0.0
        %1010 = vmatpush1.msra.mxu0 0.0
        %1011 = vmatprep.subr.mxu0 0.0
        %1012 = vmatpush1.msra.mxu0 0.0
        %1013 = vmatprep.subr.mxu0 0.0
        %1014 = vmatpush1.msra.mxu0 0.0
        %1015 = vmatprep.subr.mxu0 0.0
        %1016 = vmatpush1.msra.mxu0 0.0
        %1017 = vmatprep.subr.mxu0 0.0
        %1018 = vmatpush1.msra.mxu0 0.0
        %1019 = vmatprep.subr.mxu0 0.0
        %1020 = vmatpush1.msra.mxu0 0.0
        %1021 = vmatprep.mubr.f32.mxu0 0.0
        %1022 = vmatmul.mubr.f32.gmra.mrb[0].mxu0 %v821
        %v1023 = vpop.f32.mrb[0].mxu0
        %v1024 = vadd.f32 %v774, %v1023
        %v1025 = vpop.f32.mrb[0].mxu0
        %v1026 = vadd.f32 %v776, %v1025
        %1027 = vmatprep.mubr.f32.mxu0 0.0
        %1028 = vmatmul.mubr.f32.gmra.mrb[0].mxu0 %v824
        %v1029 = vpop.f32.mrb[0].mxu0
        %v1030 = vadd.f32 %v780, %v1029
        %v1031 = vpop.f32.mrb[0].mxu0
        %v1032 = vadd.f32 %v782, %v1031
        %1033 = vmatprep.mubr.f32.mxu0 0.0
        %1034 = vmatmul.mubr.f32.gmra.mrb[0].mxu0 %v827
        %v1035 = vpop.f32.mrb[0].mxu0
        %v1036 = vadd.f32 %v786, %v1035
        %v1037 = vpop.f32.mrb[0].mxu0
        %v1038 = vadd.f32 %v788, %v1037
        %1039 = vmatprep.mubr.f32.mxu0 0.0
        %1040 = vmatmul.mubr.f32.gmra.mrb[0].mxu0 %v830
        %v1041 = vpop.f32.mrb[0].mxu0
        %v1042 = vadd.f32 %v792, %v1041
        %v1043 = vpop.f32.mrb[0].mxu0
        %v1044 = vadd.f32 %v794, %v1043
        %1045 = vmatprep.mubr.f32.mxu0 0.0
        %1046 = vmatmul.mubr.f32.gmra.mrb[0].mxu0 %v833
        %v1047 = vpop.f32.mrb[0].mxu0
        %v1048 = vadd.f32 %v798, %v1047
        %v1049 = vpop.f32.mrb[0].mxu0
        %v1050 = vadd.f32 %v800, %v1049
        %1051 = vmatprep.mubr.f32.mxu0 0.0
        %1052 = vmatmul.mubr.f32.gmra.mrb[0].mxu0 %v836
        %v1053 = vpop.f32.mrb[0].mxu0
        %v1054 = vadd.f32 %v804, %v1053
        %v1055 = vpop.f32.mrb[0].mxu0
        %v1056 = vadd.f32 %v806, %v1055
        %1057 = vmatprep.mubr.f32.mxu0 0.0
        %1058 = vmatmul.mubr.f32.gmra.mrb[0].mxu0 %v839
        %v1059 = vpop.f32.mrb[0].mxu0
        %v1060 = vadd.f32 %v810, %v1059
        %v1061 = vpop.f32.mrb[0].mxu0
        %v1062 = vadd.f32 %v812, %v1061
        %1063 = vmatprep.mubr.f32.mxu0 0.0
        %1064 = vmatmul.mubr.f32.gmra.mrb[0].mxu0 %v842
        %v1065 = vpop.f32.mrb[0].mxu0
        %v1066 = vadd.f32 %v816, %v1065
        %v1067 = vpop.f32.mrb[0].mxu0
        %v1068 = vadd.f32 %v818, %v1067
        %1069 = vdwg.mxu0
        %v1070 = vld [vmem:[%s3] sm:$0xff]
        %v1071 = vld [vmem:[%s3 + $0x8] sm:$0xff]
        %v1072 = vld [vmem:[%s3 + $0x10] sm:$0xff]
        %v1073 = vld [vmem:[%s3 + $0x18] sm:$0xff]
        %v1074 = vld [vmem:[%s3 + $0x20] sm:$0xff]
        %v1075 = vld [vmem:[%s3 + $0x28] sm:$0xff]
        %v1076 = vld [vmem:[%s3 + $0x30] sm:$0xff]
        %v1077 = vld [vmem:[%s3 + $0x38] sm:$0xff]
        %1079 = vset.pattern.permute.xlu0 0
        %1080 = vperm.xlu0 %1079, %v1070
        %v1081 = vpop.permute.xlu0 %1080
        %1084 = vset.pattern.permute.xlu0 0
        %1085 = vperm.xlu0 %1084, %v1071
        %v1086 = vpop.permute.xlu0 %1085
        %1089 = vset.pattern.permute.xlu0 0
        %1090 = vperm.xlu0 %1089, %v1072
        %v1091 = vpop.permute.xlu0 %1090
        %1094 = vset.pattern.permute.xlu0 0
        %1095 = vperm.xlu0 %1094, %v1073
        %v1096 = vpop.permute.xlu0 %1095
        %1099 = vset.pattern.permute.xlu0 0
        %1100 = vperm.xlu0 %1099, %v1074
        %v1101 = vpop.permute.xlu0 %1100
        %1104 = vset.pattern.permute.xlu0 0
        %1105 = vperm.xlu0 %1104, %v1075
        %v1106 = vpop.permute.xlu0 %1105
        %1109 = vset.pattern.permute.xlu0 0
        %1110 = vperm.xlu0 %1109, %v1076
        %v1111 = vpop.permute.xlu0 %1110
        %1114 = vset.pattern.permute.xlu0 0
        %1115 = vperm.xlu0 %1114, %v1077
        %v1116 = vpop.permute.xlu0 %1115
        %v1118 = vadd.f32 %v911, %v1081
        %v1119 = vadd.f32 %v913, %v1081
        %v1120 = vadd.f32 %v1024, %v1081
        %v1121 = vadd.f32 %v1026, %v1081
        %v1122 = vadd.f32 %v917, %v1086
        %v1123 = vadd.f32 %v919, %v1086
        %v1124 = vadd.f32 %v1030, %v1086
        %v1125 = vadd.f32 %v1032, %v1086
        %v1126 = vadd.f32 %v923, %v1091
        %v1127 = vadd.f32 %v925, %v1091
        %v1128 = vadd.f32 %v1036, %v1091
        %v1129 = vadd.f32 %v1038, %v1091
        %v1130 = vadd.f32 %v929, %v1096
        %v1131 = vadd.f32 %v931, %v1096
        %v1132 = vadd.f32 %v1042, %v1096
        %v1133 = vadd.f32 %v1044, %v1096
        %v1134 = vadd.f32 %v935, %v1101
        %v1135 = vadd.f32 %v937, %v1101
        %v1136 = vadd.f32 %v1048, %v1101
        %v1137 = vadd.f32 %v1050, %v1101
        %v1138 = vadd.f32 %v941, %v1106
        %v1139 = vadd.f32 %v943, %v1106
        %v1140 = vadd.f32 %v1054, %v1106
        %v1141 = vadd.f32 %v1056, %v1106
        %v1142 = vadd.f32 %v947, %v1111
        %v1143 = vadd.f32 %v949, %v1111
        %v1144 = vadd.f32 %v1060, %v1111
        %v1145 = vadd.f32 %v1062, %v1111
        %v1146 = vadd.f32 %v953, %v1116
        %v1147 = vadd.f32 %v955, %v1116
        %v1148 = vadd.f32 %v1066, %v1116
        %v1149 = vadd.f32 %v1068, %v1116
        %v1150 = vmax.f32 %v1118, 0.0
        %v1151 = vmax.f32 %v1119, 0.0
        %v1152 = vmax.f32 %v1120, 0.0
        %v1153 = vmax.f32 %v1121, 0.0
        %v1154 = vmax.f32 %v1122, 0.0
        %v1155 = vmax.f32 %v1123, 0.0
        %v1156 = vmax.f32 %v1124, 0.0
        %v1157 = vmax.f32 %v1125, 0.0
        %v1158 = vmax.f32 %v1126, 0.0
        %v1159 = vmax.f32 %v1127, 0.0
        %v1160 = vmax.f32 %v1128, 0.0
        %v1161 = vmax.f32 %v1129, 0.0
        %v1162 = vmax.f32 %v1130, 0.0
        %v1163 = vmax.f32 %v1131, 0.0
        %v1164 = vmax.f32 %v1132, 0.0
        %v1165 = vmax.f32 %v1133, 0.0
        %v1166 = vmax.f32 %v1134, 0.0
        %v1167 = vmax.f32 %v1135, 0.0
        %v1168 = vmax.f32 %v1136, 0.0
        %v1169 = vmax.f32 %v1137, 0.0
        %v1170 = vmax.f32 %v1138, 0.0
        %v1171 = vmax.f32 %v1139, 0.0
        %v1172 = vmax.f32 %v1140, 0.0
        %v1173 = vmax.f32 %v1141, 0.0
        %v1174 = vmax.f32 %v1142, 0.0
        %v1175 = vmax.f32 %v1143, 0.0
        %v1176 = vmax.f32 %v1144, 0.0
        %v1177 = vmax.f32 %v1145, 0.0
        %v1178 = vmax.f32 %v1146, 0.0
        %v1179 = vmax.f32 %v1147, 0.0
        %v1180 = vmax.f32 %v1148, 0.0
        %v1181 = vmax.f32 %v1149, 0.0
        %v1182 = vld [vmem:[%s4] sm:$0x1]
        %v1183 = vld [vmem:[#allocation2] sm:$0x1]
        %1185 = vset.pattern.permute.xlu0 0
        %1186 = vperm.xlu0 %1185, %v1183
        %v1187 = vpop.permute.xlu0 %1186
        %v1189 = vlaneseq
        %v1190 = vshrl.u32 %v1189, 7
        %v1191 = vsub.s32 0, %v1190
        %v1192 = vrot.slane %v1187, %v1191
        %v1194 = vsel %vm569, %v1182, 0
        %1196 = vmatprep.subr.mxu0 %v1151
        %1197 = vmatpush1.msra.mxu0 %v1150
        %1198 = vmatprep.subr.mxu0 %v1155
        %1199 = vmatpush1.msra.mxu0 %v1154
        %1200 = vmatprep.subr.mxu0 %v1159
        %1201 = vmatpush1.msra.mxu0 %v1158
        %1202 = vmatprep.subr.mxu0 %v1163
        %1203 = vmatpush1.msra.mxu0 %v1162
        %1204 = vmatprep.subr.mxu0 %v1167
        %1205 = vmatpush1.msra.mxu0 %v1166
        %1206 = vmatprep.subr.mxu0 %v1171
        %1207 = vmatpush1.msra.mxu0 %v1170
        %1208 = vmatprep.subr.mxu0 %v1175
        %1209 = vmatpush1.msra.mxu0 %v1174
        %1210 = vmatprep.subr.mxu0 %v1179
        %1211 = vmatpush1.msra.mxu0 %v1178
        %1212 = vmatprep.subr.mxu0 0.0
        %1213 = vmatpush1.msra.mxu0 0.0
        %1214 = vmatprep.subr.mxu0 0.0
        %1215 = vmatpush1.msra.mxu0 0.0
        %1216 = vmatprep.subr.mxu0 0.0
        %1217 = vmatpush1.msra.mxu0 0.0
        %1218 = vmatprep.subr.mxu0 0.0
        %1219 = vmatpush1.msra.mxu0 0.0
        %1220 = vmatprep.subr.mxu0 0.0
        %1221 = vmatpush1.msra.mxu0 0.0
        %1222 = vmatprep.subr.mxu0 0.0
        %1223 = vmatpush1.msra.mxu0 0.0
        %1224 = vmatprep.subr.mxu0 0.0
        %1225 = vmatpush1.msra.mxu0 0.0
        %1226 = vmatprep.subr.mxu0 0.0
        %1227 = vmatpush1.msra.mxu0 0.0
        %1228 = vmatprep.subr.mxu0 0.0
        %1229 = vmatpush1.msra.mxu0 0.0
        %1230 = vmatprep.subr.mxu0 0.0
        %1231 = vmatpush1.msra.mxu0 0.0
        %1232 = vmatprep.subr.mxu0 0.0
        %1233 = vmatpush1.msra.mxu0 0.0
        %1234 = vmatprep.subr.mxu0 0.0
        %1235 = vmatpush1.msra.mxu0 0.0
        %1236 = vmatprep.subr.mxu0 0.0
        %1237 = vmatpush1.msra.mxu0 0.0
        %1238 = vmatprep.subr.mxu0 0.0
        %1239 = vmatpush1.msra.mxu0 0.0
        %1240 = vmatprep.subr.mxu0 0.0
        %1241 = vmatpush1.msra.mxu0 0.0
        %1242 = vmatprep.subr.mxu0 0.0
        %1243 = vmatpush1.msra.mxu0 0.0
        %1244 = vmatprep.subr.mxu0 0.0
        %1245 = vmatpush1.msra.mxu0 0.0
        %1246 = vmatprep.subr.mxu0 0.0
        %1247 = vmatpush1.msra.mxu0 0.0
        %1248 = vmatprep.subr.mxu0 0.0
        %1249 = vmatpush1.msra.mxu0 0.0
        %1250 = vmatprep.subr.mxu0 0.0
        %1251 = vmatpush1.msra.mxu0 0.0
        %1252 = vmatprep.subr.mxu0 0.0
        %1253 = vmatpush1.msra.mxu0 0.0
        %1254 = vmatprep.subr.mxu0 0.0
        %1255 = vmatpush1.msra.mxu0 0.0
        %1256 = vmatprep.subr.mxu0 0.0
        %1257 = vmatpush1.msra.mxu0 0.0
        %1258 = vmatprep.subr.mxu0 0.0
        %1259 = vmatpush1.msra.mxu0 0.0
        %1260 = vmatprep.mubr.f32.mxu0 0.0
        %1261 = vmatmul.mubr.f32.gmra.mrb[0].mxu0 %v1194
        %v1262 = vpop.f32.mrb[0].mxu0
        %v1263 = vadd.f32 %v1192, %v1262
        %v1264 = vpop.f32.mrb[0].mxu0
        %v1265 = vadd.f32 %v1192, %v1264
        %1266 = vdwg.mxu0
        %1267 = vmatprep.subr.mxu0 %v1153
        %1268 = vmatpush1.msra.mxu0 %v1152
        %1269 = vmatprep.subr.mxu0 %v1157
        %1270 = vmatpush1.msra.mxu0 %v1156
        %1271 = vmatprep.subr.mxu0 %v1161
        %1272 = vmatpush1.msra.mxu0 %v1160
        %1273 = vmatprep.subr.mxu0 %v1165
        %1274 = vmatpush1.msra.mxu0 %v1164
        %1275 = vmatprep.subr.mxu0 %v1169
        %1276 = vmatpush1.msra.mxu0 %v1168
        %1277 = vmatprep.subr.mxu0 %v1173
        %1278 = vmatpush1.msra.mxu0 %v1172
        %1279 = vmatprep.subr.mxu0 %v1177
        %1280 = vmatpush1.msra.mxu0 %v1176
        %1281 = vmatprep.subr.mxu0 %v1181
        %1282 = vmatpush1.msra.mxu0 %v1180
        %1283 = vmatprep.subr.mxu0 0.0
        %1284 = vmatpush1.msra.mxu0 0.0
        %1285 = vmatprep.subr.mxu0 0.0
        %1286 = vmatpush1.msra.mxu0 0.0
        %1287 = vmatprep.subr.mxu0 0.0
        %1288 = vmatpush1.msra.mxu0 0.0
        %1289 = vmatprep.subr.mxu0 0.0
        %1290 = vmatpush1.msra.mxu0 0.0
        %1291 = vmatprep.subr.mxu0 0.0
        %1292 = vmatpush1.msra.mxu0 0.0
        %1293 = vmatprep.subr.mxu0 0.0
        %1294 = vmatpush1.msra.mxu0 0.0
        %1295 = vmatprep.subr.mxu0 0.0
        %1296 = vmatpush1.msra.mxu0 0.0
        %1297 = vmatprep.subr.mxu0 0.0
        %1298 = vmatpush1.msra.mxu0 0.0
        %1299 = vmatprep.subr.mxu0 0.0
        %1300 = vmatpush1.msra.mxu0 0.0
        %1301 = vmatprep.subr.mxu0 0.0
        %1302 = vmatpush1.msra.mxu0 0.0
        %1303 = vmatprep.subr.mxu0 0.0
        %1304 = vmatpush1.msra.mxu0 0.0
        %1305 = vmatprep.subr.mxu0 0.0
        %1306 = vmatpush1.msra.mxu0 0.0
        %1307 = vmatprep.subr.mxu0 0.0
        %1308 = vmatpush1.msra.mxu0 0.0
        %1309 = vmatprep.subr.mxu0 0.0
        %1310 = vmatpush1.msra.mxu0 0.0
        %1311 = vmatprep.subr.mxu0 0.0
        %1312 = vmatpush1.msra.mxu0 0.0
        %1313 = vmatprep.subr.mxu0 0.0
        %1314 = vmatpush1.msra.mxu0 0.0
        %1315 = vmatprep.subr.mxu0 0.0
        %1316 = vmatpush1.msra.mxu0 0.0
        %1317 = vmatprep.subr.mxu0 0.0
        %1318 = vmatpush1.msra.mxu0 0.0
        %1319 = vmatprep.subr.mxu0 0.0
        %1320 = vmatpush1.msra.mxu0 0.0
        %1321 = vmatprep.subr.mxu0 0.0
        %1322 = vmatpush1.msra.mxu0 0.0
        %1323 = vmatprep.subr.mxu0 0.0
        %1324 = vmatpush1.msra.mxu0 0.0
        %1325 = vmatprep.subr.mxu0 0.0
        %1326 = vmatpush1.msra.mxu0 0.0
        %1327 = vmatprep.subr.mxu0 0.0
        %1328 = vmatpush1.msra.mxu0 0.0
        %1329 = vmatprep.subr.mxu0 0.0
        %1330 = vmatpush1.msra.mxu0 0.0
        %1331 = vmatprep.mubr.f32.mxu0 0.0
        %1332 = vmatmul.mubr.f32.gmra.mrb[0].mxu0 %v1194
        %v1333 = vpop.f32.mrb[0].mxu0
        %v1334 = vadd.f32 %v1192, %v1333
        %v1335 = vpop.f32.mrb[0].mxu0
        %v1336 = vadd.f32 %v1192, %v1335
        %1337 = vdwg.mxu0
        %v1342 = vcombine.low %v1263, %v1265
        %v1343 = vcombine.low %v1334, %v1336
        %v1345 = vunpack.c.l.s4 1966171168
        %v1346 = vunpack.c.0.s8 %v1345
        %v1347 = vlaneseq
        %v1348 = vshrl.u32 %v1347, 7
        %v1349 = vsub.s32 %v1346, %v1348
        %v1350 = vrot.slane %v1342, %v1349
        %v1352 = vunpack.c.l.s4 1966171168
        %v1353 = vunpack.c.0.s8 %v1352
        %v1354 = vlaneseq
        %v1355 = vshrl.u32 %v1354, 7
        %v1356 = vsub.s32 %v1353, %v1355
        %v1357 = vrot.slane %v1343, %v1356
        %v1358 = vcombine.low %v1350, %v1357
        %v1360 = vunpack.c.l.s4 1966171168
        %v1361 = vunpack.c.0.s8 %v1360
        %v1362 = vlaneseq
        %v1363 = vshrl.u32 %v1362, 7
        %v1364 = vsub.s32 %v1361, %v1363
        %v1365 = vrot.slane %v1358, %v1364
        %v1367 = vlaneseq
        %vm1368 = vcmp.ge.s32.totalorder %v1367, 0
        %vm1369 = vcmp.lt.s32.totalorder %v1367, 512
        %vm1370 = vmand %vm1368, %vm1369
        %1371 = vst.msk [vmem:[%s284] sm:$0xf] %vm1370, %v1365
        %s1372 = sand.u32 %s165, 1
        %s1373 = scalar_lea.sflag [#allocation5], %s1372
        %s1374 = sand.u32 %s165, 1
        %s1375 = smul.addr %s1374, 4
        %s1376 = scalar_lea.vmem [#allocation8], %s1375
        // Predicated region
        $region53: #{tpu_custom_call.1} parent=43 // pred_check
          %p1377 = pneg %p175
        $region54: #{tpu_custom_call.1} parent=43 // pred_check_branch
          %1379 = sbr.rel (%p1377) target = $region56
        $region55: #{tpu_custom_call.1} parent=43 // pred_region
          %s1380 = smul.u32 4, %s26
          %s1382 = ssub.s32 64, 64
          %1383 = vsyncadd %s1373, %s1382
          %s1384 = smul.addr %s1380, 16
          %s1385 = scalar_lea.hbm %s6, %s1384
          %s1387 = sshll.u32 %s1376, 4
          %s1388 = int_to_ptr.vmem [resolvable:$true] %s1387
          %1390 = dma.vmem_to_hbm [thread:$0]  %s1388, 64, %s1385, %s1373
        $region56: #{tpu_custom_call.1} parent=43 // pred_fallthru
          _
      $region44: #{tpu_custom_call.1} parent=5 // pred_fallthru
        _
      %p1391 = scmp.le.s32.totalorder 2, %s21
      // Predicated region
      $region57: #{tpu_custom_call.1} parent=5 // pred_check
        %p1392 = pneg %p1391
      $region58: #{tpu_custom_call.1} parent=5 // pred_check_branch
        %1394 = sbr.rel (%p1392) target = $region60
      $region59: #{tpu_custom_call.1} parent=5 // pred_region
        %s1395 = ssub.s32 %s21, 2
        // Predicated region
        $region61: #{tpu_custom_call.1} parent=59 // pred_check
          %p1396 = pneg %p181
        $region62: #{tpu_custom_call.1} parent=59 // pred_check_branch
          %1398 = sbr.rel (%p1396) target = $region64
        $region63: #{tpu_custom_call.1} parent=59 // pred_region
          %s1399 = sand.u32 %s166, 1
          %s1400 = scalar_lea.sflag [#allocation5], %s1399
          %s1401 = sand.u32 %s166, 1
          %s1402 = smul.addr %s1401, 4
          %s1403 = scalar_lea.vmem [#allocation8], %s1402
          %1404 = dma.done %s1400, 64
        $region64: #{tpu_custom_call.1} parent=59 // pred_fallthru
          _
      $region60: #{tpu_custom_call.1} parent=5 // pred_fallthru
        _
    $region6: #{tpu_custom_call.1} parent=1 // loop_footer
      %s25 = sadd.s32 1, %s21
    $region7: #{tpu_custom_call.1} parent=1 // loop_footer_branch
      %20 = sbr.rel target = $region3
    $region8: #{tpu_custom_call.1} parent=1 // loop_exit
      _
    %1405 = vsyncpa [#allocation4], 1
    %s1406 = scalar_lea.sflag [#allocation4], 1
    %1407 = vsyncpa %s1406, 1
    %1408 = vsyncpa [#allocation7], 1
    %1409 = vsyncpa [#allocation5], 1
    %s1410 = scalar_lea.sflag [#allocation5], 1
    %1411 = vsyncpa %s1410, 1

</llo_original>
